<compile_context>
chip_gen: v6e
topology: v6e:2x2x1
jax: 0.10.0
libtpu: 0.0.40
codegen_flags: <defaults>
</compile_context>

<pallas_src>
import functools

import jax
import jax.numpy as jnp
from jax.experimental import pallas as pl
from jax.experimental.pallas import tpu as pltpu

EPS = 1e-5  # PyTorch BatchNorm2d default eps


def _round_up(x, m):
    return (x + m - 1) // m * m


def _fused_conv_block_kernel(x_hbm_ref, w1_ref, w2_ref, o_ref,
                             x_ext_ref, y1_ext_ref, dma_sem,
                             *, W, Hp, Wp, R, R_raw, M, count, eps):
    """Both (conv3x3 -> BN(train) -> ReLU) stages, fused.

    x_hbm_ref:  (Cin_p,  R)        input slab in HBM (channels on sublanes, flattened
                                   padded pixels on lanes, tail zero-padded to R)
    w1_ref:     (Cout_p, 9*Cin_p)  tap-major conv1 weights (VMEM)
    w2_ref:     (Cout_p, 9*Cout_p) tap-major conv2 weights (VMEM)
    o_ref:      (Cout_p, R)        output slab (VMEM)
    x_ext_ref:  (Cin_p,  R + 2*M)  VMEM scratch: input slab + 128-aligned lane margins
    y1_ext_ref: (Cout_p, R + 2*M)  VMEM scratch: stage-1 output + margins
    dma_sem:    DMA completion semaphore
    """
    Cin_p = x_ext_ref.shape[0]
    Cout_p = y1_ext_ref.shape[0]

    # Land the input slab straight in the interior of the margin-bearing scratch
    # (no XLA pad copy / extra HBM round trip). M is 128-aligned so the DMA target,
    # the interior store below and the centre-tap slice are all lane-aligned.
    cp = pltpu.make_async_copy(x_hbm_ref, x_ext_ref.at[:, pl.ds(M, R)], dma_sem)
    cp.start()

    # While the DMA is in flight: zero ONLY the M-wide lane margins of both extended
    # slabs (the interiors get fully overwritten), and build the valid-pixel mask.
    x_ext_ref[:, :M] = jnp.zeros((Cin_p, M), jnp.float32)
    x_ext_ref[:, M + R:] = jnp.zeros((Cin_p, M), jnp.float32)
    y1_ext_ref[:, :M] = jnp.zeros((Cout_p, M), jnp.float32)
    y1_ext_ref[:, M + R:] = jnp.zeros((Cout_p, M), jnp.float32)

    # In-kernel valid-pixel mask over the R lanes (no HBM mask stream). A lane is a
    # real pixel iff it lies below R_raw and outside its image's zero-pad ring.
    # Index math is done in f32 (exact for these magnitudes) with +/-1 fix-ups so
    # floor rounding can never flip a boundary lane.
    ri = jax.lax.broadcasted_iota(jnp.int32, (1, R), 1)
    rf = ri.astype(jnp.float32)
    img = float(Hp * Wp)
    q = jnp.floor(rf / img)
    p = rf - q * img                                   # pixel index within its image
    p = jnp.where(p < 0.0, p + img, p)
    p = jnp.where(p >= img, p - img, p)
    cq = jnp.floor(p / float(Wp))
    col = p - cq * float(Wp)                           # column within the padded row
    col = jnp.where(col < 0.0, col + float(Wp), col)
    col = jnp.where(col >= float(Wp), col - float(Wp), col)
    row_ok = (p >= float(Wp)) & (p < float((Hp - 1) * Wp))
    col_ok = (col >= 1.0) & (col <= float(W))
    mask = ((ri < R_raw) & row_ok & col_ok).astype(jnp.float32)    # (1, R)

    def stage(a_ref, w_ref, zero_ring):
        # In-kernel im2col: 9 statically shifted lane slices of the extended slab,
        # stacked on sublanes -> one (9*C, R) operand -> ONE MXU matmul (K = 9*C).
        cols = jnp.concatenate(
            [a_ref[:, M + (ky - 1) * Wp + (kx - 1):
                      M + (ky - 1) * Wp + (kx - 1) + R]
             for ky in range(3) for kx in range(3)],
            axis=0)                                               # (9*C, R)
        y = jnp.dot(w_ref[...], cols,
                    preferred_element_type=jnp.float32)           # (Cout_p, R)
        # Train-mode BatchNorm2d (identity affine): one-pass stats over the `count`
        # valid pixels (pad ring + lane-alignment tail masked out of the stats).
        ym = y * mask
        mean = jnp.sum(ym, axis=1, keepdims=True) / count         # (Cout_p, 1)
        ex2 = jnp.sum(ym * ym, axis=1, keepdims=True) / count
        inv = jax.lax.rsqrt(ex2 - mean * mean + eps)
        out = jnp.maximum((y - mean) * inv, 0.0)                  # ReLU
        if zero_ring:
            # Re-zero the pad ring / tail: it doubles as zero-padding for stage 2.
            out = out * mask
        return out

    cp.wait()
    # Stage 1; result never leaves VMEM (parked in the margin-bearing scratch).
    y1_ext_ref[:, M:M + R] = stage(x_ext_ref, w1_ref, zero_ring=True)
    # Stage 2 straight from VMEM; wrapper slices the (unmasked) pad ring away.
    o_ref[...] = stage(y1_ext_ref, w2_ref, zero_ring=False)


def _tap_major_weights(w_hwio, c_in, c_in_p, c_out_p):
    """(3,3,Cin,Cout) HWIO -> (Cout_p, 9*Cin_p) with K ordered (ky, kx, cin)."""
    c_out = w_hwio.shape[-1]
    w = jnp.pad(w_hwio, ((0, 0), (0, 0), (0, c_in_p - c_in), (0, 0)))
    w = jnp.transpose(w, (3, 0, 1, 2)).reshape(c_out, 9 * c_in_p)
    return jnp.pad(w, ((0, c_out_p - c_out), (0, 0)))


@jax.jit
def conv_block_forward(x_nchw, params):
    """conv_block.forward with norm_name='batch'. Input/output are NCHW (PyTorch)."""
    N, Cin, H, W = x_nchw.shape
    Cout = params["w1"].shape[-1]
    Hp, Wp = H + 2, W + 2
    R_raw = N * Hp * Wp                      # real flattened padded pixel count
    R = _round_up(R_raw, 128)                # lane-dense, 128-aligned slab width
    M = _round_up(Wp + 1, 128)               # 128-aligned lane margin for tap slices
    Cin_p = _round_up(Cin, 8)                # sublane-align channel blocks
    Cout_p = _round_up(Cout, 8)

    # NCHW -> (channels, flattened padded pixels), tail zero-padded to R lanes.
    xp = jnp.pad(x_nchw, ((0, 0), (0, Cin_p - Cin), (1, 1), (1, 1)))  # (N,Cin_p,Hp,Wp)
    x2 = jnp.transpose(xp, (1, 0, 2, 3)).reshape(Cin_p, R_raw)
    x2 = jnp.pad(x2, ((0, 0), (0, R - R_raw)))                        # (Cin_p, R)

    w1m = _tap_major_weights(params["w1"], Cin, Cin_p, Cout_p)    # (Cout_p, 9*Cin_p)
    w2m = _tap_major_weights(params["w2"], Cout, Cout_p, Cout_p)  # (Cout_p, 9*Cout_p)
    # NOTE: conv biases are intentionally NOT passed to the kernel -- a per-channel
    # constant cancels exactly under train-mode BatchNorm with identity affine.

    # VMEM footprint (slabs + 9x im2col temps + weights) with 2x headroom, clamped
    # to the smallest physical VMEM across generations (v7x: 64 MiB).
    est_bytes = 4 * ((Cin_p + Cout_p) * (R + 2 * M) + Cout_p * R
                     + 9 * (Cin_p + Cout_p) * R + w1m.size + w2m.size)
    vmem_limit = int(min(64 * 1024 * 1024, max(2 * est_bytes, 16 * 1024 * 1024)))

    kern = functools.partial(_fused_conv_block_kernel, W=W, Hp=Hp, Wp=Wp,
                             R=R, R_raw=R_raw, M=M,
                             count=float(N * H * W), eps=EPS)
    out = pl.pallas_call(
        kern,
        out_shape=jax.ShapeDtypeStruct((Cout_p, R), jnp.float32),
        in_specs=[pl.BlockSpec(memory_space=pl.ANY),                   # x2 -> manual DMA
                  pl.BlockSpec(memory_space=pltpu.MemorySpace.VMEM),   # w1
                  pl.BlockSpec(memory_space=pltpu.MemorySpace.VMEM)],  # w2
        out_specs=pl.BlockSpec(memory_space=pltpu.MemorySpace.VMEM),
        scratch_shapes=[pltpu.VMEM((Cin_p, R + 2 * M), jnp.float32),
                        pltpu.VMEM((Cout_p, R + 2 * M), jnp.float32),
                        pltpu.SemaphoreType.DMA(())],
        compiler_params=pltpu.CompilerParams(vmem_limit_bytes=vmem_limit),
    )(x2, w1m, w2m)
    # TODO(synk): for large N*H*W add a pixel/batch-tiled grid with two-pass BN
    # (per-tile sum/sumsq accumulation on an "arbitrary" axis + a normalize pass,
    # "parallel" batch axis so v7x's two TensorCores split the work) and split the
    # K=9C matmul per-ky to keep the im2col temp inside v7x's 64 MiB VMEM.

    y = out[:Cout, :R_raw].reshape(Cout, N, Hp, Wp)[:, :, 1:H + 1, 1:W + 1]
    return jnp.transpose(y, (1, 0, 2, 3))                             # (N, Cout, H, W)


def init_params(key, in_c, out_c):
    """Deterministic Conv2d-style init (uniform with PyTorch's default bound)."""
    k1, k2, k3, k4 = jax.random.split(key, 4)
    bound1 = 1.0 / jnp.sqrt(in_c * 9.0)
    bound2 = 1.0 / jnp.sqrt(out_c * 9.0)
    return {
        "w1": jax.random.uniform(k1, (3, 3, in_c, out_c), jnp.float32, -bound1, bound1),
        "b1": jax.random.uniform(k2, (out_c,), jnp.float32, -bound1, bound1),
        "w2": jax.random.uniform(k3, (3, 3, out_c, out_c), jnp.float32, -bound2, bound2),
        "b2": jax.random.uniform(k4, (out_c,), jnp.float32, -bound2, bound2),
    }


def _reference_forward(x_nchw, params):
    """Plain-JAX reference (includes the conv biases; they cancel under train BN)."""
    def stage(x, w_hwio, b):
        w_oihw = jnp.transpose(w_hwio, (3, 2, 0, 1))
        y = jax.lax.conv_general_dilated(
            x, w_oihw, window_strides=(1, 1), padding="SAME",
            dimension_numbers=("NCHW", "OIHW", "NCHW")) + b[None, :, None, None]
        mean = jnp.mean(y, axis=(0, 2, 3), keepdims=True)
        var = jnp.mean((y - mean) ** 2, axis=(0, 2, 3), keepdims=True)
        return jnp.maximum((y - mean) * jax.lax.rsqrt(var + EPS), 0.0)

    x = stage(x_nchw, params["w1"], params["b1"])
    x = stage(x, params["w2"], params["b2"])
    return x


if __name__ == "__main__":
    N, IN_C, OUT_C, H, W = 2, 4, 8, 16, 16

    key = jax.random.PRNGKey(0)
    kx_, kp = jax.random.split(key)
    x = jax.random.normal(kx_, (N, IN_C, H, W), jnp.float32)   # NCHW, like PyTorch
    params = init_params(kp, IN_C, OUT_C)

    out = jax.block_until_ready(conv_block_forward(x, params))
    assert out.shape == (N, OUT_C, H, W), out.shape

    ref = jax.block_until_ready(_reference_forward(x, params))
    max_err = float(jnp.max(jnp.abs(out - ref)))
    assert jnp.allclose(out, ref, atol=1e-3, rtol=1e-3), max_err

    print("KERNEL_OK")
</pallas_src>

<mosaic_0001>
module attributes {stable_mosaic.version = 11 : i64} {
  func.func @_fused_conv_block_kernel(%arg0: memref<8x768xf32, #tpu.memory_space<any>>, %arg1: memref<8x72xf32, #tpu.memory_space<vmem>>, %arg2: memref<8x72xf32, #tpu.memory_space<vmem>>, %arg3: memref<8x768xf32, #tpu.memory_space<vmem>>, %arg4: memref<8x1024xf32, #tpu.memory_space<vmem>>, %arg5: memref<8x1024xf32, #tpu.memory_space<vmem>>, %arg6: memref<!tpu.dma_semaphore, #tpu.memory_space<semaphore_mem>>) attributes {dimension_semantics = [], scalar_prefetch = 0 : i64, scratch_operands = 3 : i64, tpu.core_type = #tpu.core_type<tc>} {
    %c0_i32 = arith.constant 0 : i32
    %c128_i32 = arith.constant 128 : i32
    %0 = tpu.memref_slice %arg4[%c0_i32, %c128_i32] : memref<8x1024xf32, #tpu.memory_space<vmem>> -> memref<8x768xf32, #tpu.memory_space<vmem>>
    tpu.enqueue_dma source(%arg0 : memref<8x768xf32, #tpu.memory_space<any>>) target(%0 : memref<8x768xf32, #tpu.memory_space<vmem>>) target_semaphore(%arg6 : memref<!tpu.dma_semaphore, #tpu.memory_space<semaphore_mem>>)
    %cst = arith.constant 0.000000e+00 : f32
    %1 = vector.broadcast %cst : f32 to vector<8x128xf32>
    %c0 = arith.constant 0 : index
    %c0_0 = arith.constant 0 : index
    %2 = vector.load %arg4[%c0, %c0_0] : memref<8x1024xf32, #tpu.memory_space<vmem>>, vector<8x128xf32>
    tpu.vector_store %arg4[%c0, %c0_0], %1 {strides = array<i32>} : memref<8x1024xf32, #tpu.memory_space<vmem>>, vector<8x128xf32>,
    %cst_1 = arith.constant 0.000000e+00 : f32
    %3 = vector.broadcast %cst_1 : f32 to vector<8x128xf32>
    %c0_2 = arith.constant 0 : index
    %c896 = arith.constant 896 : index
    %4 = vector.load %arg4[%c0_2, %c896] : memref<8x1024xf32, #tpu.memory_space<vmem>>, vector<8x128xf32>
    tpu.vector_store %arg4[%c0_2, %c896], %3 {strides = array<i32>} : memref<8x1024xf32, #tpu.memory_space<vmem>>, vector<8x128xf32>,
    %cst_3 = arith.constant 0.000000e+00 : f32
    %5 = vector.broadcast %cst_3 : f32 to vector<8x128xf32>
    %c0_4 = arith.constant 0 : index
    %c0_5 = arith.constant 0 : index
    %6 = vector.load %arg5[%c0_4, %c0_5] : memref<8x1024xf32, #tpu.memory_space<vmem>>, vector<8x128xf32>
    tpu.vector_store %arg5[%c0_4, %c0_5], %5 {strides = array<i32>} : memref<8x1024xf32, #tpu.memory_space<vmem>>, vector<8x128xf32>,
    %cst_6 = arith.constant 0.000000e+00 : f32
    %7 = vector.broadcast %cst_6 : f32 to vector<8x128xf32>
    %c0_7 = arith.constant 0 : index
    %c896_8 = arith.constant 896 : index
    %8 = vector.load %arg5[%c0_7, %c896_8] : memref<8x1024xf32, #tpu.memory_space<vmem>>, vector<8x128xf32>
    tpu.vector_store %arg5[%c0_7, %c896_8], %7 {strides = array<i32>} : memref<8x1024xf32, #tpu.memory_space<vmem>>, vector<8x128xf32>,
    %9 = tpu.iota {dimensions = array<i32: 1>} : vector<1x768xi32>
    %10 = arith.sitofp %9 : vector<1x768xi32> to vector<1x768xf32>
    %cst_9 = arith.constant 3.240000e+02 : f32
    %11 = vector.broadcast %cst_9 : f32 to vector<1x768xf32>
    %12 = arith.divf %10, %11 : vector<1x768xf32>
    %13 = math.floor %12 : vector<1x768xf32>
    %cst_10 = arith.constant 3.240000e+02 : f32
    %14 = vector.broadcast %cst_10 : f32 to vector<1x768xf32>
    %15 = arith.mulf %13, %14 : vector<1x768xf32>
    %16 = arith.subf %10, %15 : vector<1x768xf32>
    %cst_11 = arith.constant 0.000000e+00 : f32
    %17 = vector.broadcast %cst_11 : f32 to vector<1x768xf32>
    %18 = arith.cmpf olt, %16, %17 : vector<1x768xf32>
    %cst_12 = arith.constant 3.240000e+02 : f32
    %19 = vector.broadcast %cst_12 : f32 to vector<1x768xf32>
    %20 = arith.addf %16, %19 : vector<1x768xf32>
    %21 = arith.select %18, %20, %16 : vector<1x768xi1>, vector<1x768xf32>
    %cst_13 = arith.constant 3.240000e+02 : f32
    %22 = vector.broadcast %cst_13 : f32 to vector<1x768xf32>
    %23 = arith.cmpf oge, %21, %22 : vector<1x768xf32>
    %cst_14 = arith.constant 3.240000e+02 : f32
    %24 = vector.broadcast %cst_14 : f32 to vector<1x768xf32>
    %25 = arith.subf %21, %24 : vector<1x768xf32>
    %26 = arith.select %23, %25, %21 : vector<1x768xi1>, vector<1x768xf32>
    %cst_15 = arith.constant 1.800000e+01 : f32
    %27 = vector.broadcast %cst_15 : f32 to vector<1x768xf32>
    %28 = arith.divf %26, %27 : vector<1x768xf32>
    %29 = math.floor %28 : vector<1x768xf32>
    %cst_16 = arith.constant 1.800000e+01 : f32
    %30 = vector.broadcast %cst_16 : f32 to vector<1x768xf32>
    %31 = arith.mulf %29, %30 : vector<1x768xf32>
    %32 = arith.subf %26, %31 : vector<1x768xf32>
    %cst_17 = arith.constant 0.000000e+00 : f32
    %33 = vector.broadcast %cst_17 : f32 to vector<1x768xf32>
    %34 = arith.cmpf olt, %32, %33 : vector<1x768xf32>
    %cst_18 = arith.constant 1.800000e+01 : f32
    %35 = vector.broadcast %cst_18 : f32 to vector<1x768xf32>
    %36 = arith.addf %32, %35 : vector<1x768xf32>
    %37 = arith.select %34, %36, %32 : vector<1x768xi1>, vector<1x768xf32>
    %cst_19 = arith.constant 1.800000e+01 : f32
    %38 = vector.broadcast %cst_19 : f32 to vector<1x768xf32>
    %39 = arith.cmpf oge, %37, %38 : vector<1x768xf32>
    %cst_20 = arith.constant 1.800000e+01 : f32
    %40 = vector.broadcast %cst_20 : f32 to vector<1x768xf32>
    %41 = arith.subf %37, %40 : vector<1x768xf32>
    %42 = arith.select %39, %41, %37 : vector<1x768xi1>, vector<1x768xf32>
    %cst_21 = arith.constant 1.800000e+01 : f32
    %43 = vector.broadcast %cst_21 : f32 to vector<1x768xf32>
    %44 = arith.cmpf oge, %26, %43 : vector<1x768xf32>
    %cst_22 = arith.constant 3.060000e+02 : f32
    %45 = vector.broadcast %cst_22 : f32 to vector<1x768xf32>
    %46 = arith.cmpf olt, %26, %45 : vector<1x768xf32>
    %47 = arith.andi %44, %46 : vector<1x768xi1>
    %cst_23 = arith.constant 1.000000e+00 : f32
    %48 = vector.broadcast %cst_23 : f32 to vector<1x768xf32>
    %49 = arith.cmpf oge, %42, %48 : vector<1x768xf32>
    %cst_24 = arith.constant 1.600000e+01 : f32
    %50 = vector.broadcast %cst_24 : f32 to vector<1x768xf32>
    %51 = arith.cmpf ole, %42, %50 : vector<1x768xf32>
    %52 = arith.andi %49, %51 : vector<1x768xi1>
    %c648_i32 = arith.constant 648 : i32
    %53 = vector.broadcast %c648_i32 : i32 to vector<1x768xi32>
    %54 = arith.cmpi slt, %9, %53 : vector<1x768xi32>
    %55 = arith.andi %54, %47 : vector<1x768xi1>
    %56 = arith.andi %55, %52 : vector<1x768xi1>
    %57 = arith.extui %56 : vector<1x768xi1> to vector<1x768xi32>
    %58 = arith.sitofp %57 : vector<1x768xi32> to vector<1x768xf32>
    %c0_i32_25 = arith.constant 0 : i32
    %c128_i32_26 = arith.constant 128 : i32
    %59 = tpu.memref_slice %arg4[%c0_i32_25, %c128_i32_26] : memref<8x1024xf32, #tpu.memory_space<vmem>> -> memref<8x768xf32, #tpu.memory_space<vmem>>
    tpu.wait_dma2 semaphore(%arg6 : memref<!tpu.dma_semaphore, #tpu.memory_space<semaphore_mem>>) src(%arg0 : memref<8x768xf32, #tpu.memory_space<any>>) dst(%59 : memref<8x768xf32, #tpu.memory_space<vmem>>)
    %c0_27 = arith.constant 0 : index
    %c109 = arith.constant 109 : index
    %60 = vector.load %arg4[%c0_27, %c109] : memref<8x1024xf32, #tpu.memory_space<vmem>>, vector<8x768xf32>
    %c0_28 = arith.constant 0 : index
    %c110 = arith.constant 110 : index
    %61 = vector.load %arg4[%c0_28, %c110] : memref<8x1024xf32, #tpu.memory_space<vmem>>, vector<8x768xf32>
    %c0_29 = arith.constant 0 : index
    %c111 = arith.constant 111 : index
    %62 = vector.load %arg4[%c0_29, %c111] : memref<8x1024xf32, #tpu.memory_space<vmem>>, vector<8x768xf32>
    %c0_30 = arith.constant 0 : index
    %c127 = arith.constant 127 : index
    %63 = vector.load %arg4[%c0_30, %c127] : memref<8x1024xf32, #tpu.memory_space<vmem>>, vector<8x768xf32>
    %c0_31 = arith.constant 0 : index
    %c128 = arith.constant 128 : index
    %64 = vector.load %arg4[%c0_31, %c128] : memref<8x1024xf32, #tpu.memory_space<vmem>>, vector<8x768xf32>
    %c0_32 = arith.constant 0 : index
    %c129 = arith.constant 129 : index
    %65 = vector.load %arg4[%c0_32, %c129] : memref<8x1024xf32, #tpu.memory_space<vmem>>, vector<8x768xf32>
    %c0_33 = arith.constant 0 : index
    %c145 = arith.constant 145 : index
    %66 = vector.load %arg4[%c0_33, %c145] : memref<8x1024xf32, #tpu.memory_space<vmem>>, vector<8x768xf32>
    %c0_34 = arith.constant 0 : index
    %c146 = arith.constant 146 : index
    %67 = vector.load %arg4[%c0_34, %c146] : memref<8x1024xf32, #tpu.memory_space<vmem>>, vector<8x768xf32>
    %c0_35 = arith.constant 0 : index
    %c147 = arith.constant 147 : index
    %68 = vector.load %arg4[%c0_35, %c147] : memref<8x1024xf32, #tpu.memory_space<vmem>>, vector<8x768xf32>
    %69 = tpu.concatenate %60, %61, %62, %63, %64, %65, %66, %67, %68 in 0 : vector<8x768xf32>, vector<8x768xf32>, vector<8x768xf32>, vector<8x768xf32>, vector<8x768xf32>, vector<8x768xf32>, vector<8x768xf32>, vector<8x768xf32>, vector<8x768xf32> -> vector<72x768xf32>
    %c0_36 = arith.constant 0 : index
    %c0_37 = arith.constant 0 : index
    %70 = vector.load %arg1[%c0_36, %c0_37] : memref<8x72xf32, #tpu.memory_space<vmem>>, vector<8x72xf32>
    %cst_38 = arith.constant dense<0.000000e+00> : vector<8x768xf32>
    %71 = tpu.matmul %70, %69, %cst_38 {dimension_numbers = #tpu.dot_dimension_numbers<[1], [0], [0], [1], [0, 0, 1, 1], [], []>} : vector<8x72xf32>, vector<72x768xf32>, vector<8x768xf32> -> vector<8x768xf32>
    %72 = vector.broadcast %58 : vector<1x768xf32> to vector<8x768xf32>
    %73 = arith.mulf %71, %72 : vector<8x768xf32>
    %cst_39 = arith.constant dense<0.000000e+00> : vector<8xf32>
    %74 = vector.multi_reduction <add>, %73, %cst_39 [1] : vector<8x768xf32> to vector<8xf32>
    %75 = vector.shape_cast %74 : vector<8xf32> to vector<8x1xf32>
    %cst_40 = arith.constant 5.120000e+02 : f32
    %76 = vector.broadcast %cst_40 : f32 to vector<8x1xf32>
    %77 = arith.divf %75, %76 : vector<8x1xf32>
    %78 = arith.mulf %73, %73 : vector<8x768xf32>
    %cst_41 = arith.constant dense<0.000000e+00> : vector<8xf32>
    %79 = vector.multi_reduction <add>, %78, %cst_41 [1] : vector<8x768xf32> to vector<8xf32>
    %80 = vector.shape_cast %79 : vector<8xf32> to vector<8x1xf32>
    %cst_42 = arith.constant 5.120000e+02 : f32
    %81 = vector.broadcast %cst_42 : f32 to vector<8x1xf32>
    %82 = arith.divf %80, %81 : vector<8x1xf32>
    %83 = arith.mulf %77, %77 : vector<8x1xf32>
    %84 = arith.subf %82, %83 : vector<8x1xf32>
    %cst_43 = arith.constant 9.99999974E-6 : f32
    %85 = vector.broadcast %cst_43 : f32 to vector<8x1xf32>
    %86 = arith.addf %84, %85 : vector<8x1xf32>
    %87 = math.rsqrt %86 : vector<8x1xf32>
    %88 = vector.broadcast %77 : vector<8x1xf32> to vector<8x768xf32>
    %89 = arith.subf %71, %88 : vector<8x768xf32>
    %90 = vector.broadcast %87 : vector<8x1xf32> to vector<8x768xf32>
    %91 = arith.mulf %89, %90 : vector<8x768xf32>
    %cst_44 = arith.constant 0.000000e+00 : f32
    %92 = vector.broadcast %cst_44 : f32 to vector<8x768xf32>
    %93 = arith.maximumf %91, %92 : vector<8x768xf32>
    %94 = vector.broadcast %58 : vector<1x768xf32> to vector<8x768xf32>
    %95 = arith.mulf %93, %94 : vector<8x768xf32>
    %c0_45 = arith.constant 0 : index
    %c128_46 = arith.constant 128 : index
    %96 = vector.load %arg5[%c0_45, %c128_46] : memref<8x1024xf32, #tpu.memory_space<vmem>>, vector<8x768xf32>
    tpu.vector_store %arg5[%c0_45, %c128_46], %95 {strides = array<i32>} : memref<8x1024xf32, #tpu.memory_space<vmem>>, vector<8x768xf32>,
    %c0_47 = arith.constant 0 : index
    %c109_48 = arith.constant 109 : index
    %97 = vector.load %arg5[%c0_47, %c109_48] : memref<8x1024xf32, #tpu.memory_space<vmem>>, vector<8x768xf32>
    %c0_49 = arith.constant 0 : index
    %c110_50 = arith.constant 110 : index
    %98 = vector.load %arg5[%c0_49, %c110_50] : memref<8x1024xf32, #tpu.memory_space<vmem>>, vector<8x768xf32>
    %c0_51 = arith.constant 0 : index
    %c111_52 = arith.constant 111 : index
    %99 = vector.load %arg5[%c0_51, %c111_52] : memref<8x1024xf32, #tpu.memory_space<vmem>>, vector<8x768xf32>
    %c0_53 = arith.constant 0 : index
    %c127_54 = arith.constant 127 : index
    %100 = vector.load %arg5[%c0_53, %c127_54] : memref<8x1024xf32, #tpu.memory_space<vmem>>, vector<8x768xf32>
    %c0_55 = arith.constant 0 : index
    %c128_56 = arith.constant 128 : index
    %101 = vector.load %arg5[%c0_55, %c128_56] : memref<8x1024xf32, #tpu.memory_space<vmem>>, vector<8x768xf32>
    %c0_57 = arith.constant 0 : index
    %c129_58 = arith.constant 129 : index
    %102 = vector.load %arg5[%c0_57, %c129_58] : memref<8x1024xf32, #tpu.memory_space<vmem>>, vector<8x768xf32>
    %c0_59 = arith.constant 0 : index
    %c145_60 = arith.constant 145 : index
    %103 = vector.load %arg5[%c0_59, %c145_60] : memref<8x1024xf32, #tpu.memory_space<vmem>>, vector<8x768xf32>
    %c0_61 = arith.constant 0 : index
    %c146_62 = arith.constant 146 : index
    %104 = vector.load %arg5[%c0_61, %c146_62] : memref<8x1024xf32, #tpu.memory_space<vmem>>, vector<8x768xf32>
    %c0_63 = arith.constant 0 : index
    %c147_64 = arith.constant 147 : index
    %105 = vector.load %arg5[%c0_63, %c147_64] : memref<8x1024xf32, #tpu.memory_space<vmem>>, vector<8x768xf32>
    %106 = tpu.concatenate %97, %98, %99, %100, %101, %102, %103, %104, %105 in 0 : vector<8x768xf32>, vector<8x768xf32>, vector<8x768xf32>, vector<8x768xf32>, vector<8x768xf32>, vector<8x768xf32>, vector<8x768xf32>, vector<8x768xf32>, vector<8x768xf32> -> vector<72x768xf32>
    %c0_65 = arith.constant 0 : index
    %c0_66 = arith.constant 0 : index
    %107 = vector.load %arg2[%c0_65, %c0_66] : memref<8x72xf32, #tpu.memory_space<vmem>>, vector<8x72xf32>
    %cst_67 = arith.constant dense<0.000000e+00> : vector<8x768xf32>
    %108 = tpu.matmul %107, %106, %cst_67 {dimension_numbers = #tpu.dot_dimension_numbers<[1], [0], [0], [1], [0, 0, 1, 1], [], []>} : vector<8x72xf32>, vector<72x768xf32>, vector<8x768xf32> -> vector<8x768xf32>
    %109 = vector.broadcast %58 : vector<1x768xf32> to vector<8x768xf32>
    %110 = arith.mulf %108, %109 : vector<8x768xf32>
    %cst_68 = arith.constant dense<0.000000e+00> : vector<8xf32>
    %111 = vector.multi_reduction <add>, %110, %cst_68 [1] : vector<8x768xf32> to vector<8xf32>
    %112 = vector.shape_cast %111 : vector<8xf32> to vector<8x1xf32>
    %cst_69 = arith.constant 5.120000e+02 : f32
    %113 = vector.broadcast %cst_69 : f32 to vector<8x1xf32>
    %114 = arith.divf %112, %113 : vector<8x1xf32>
    %115 = arith.mulf %110, %110 : vector<8x768xf32>
    %cst_70 = arith.constant dense<0.000000e+00> : vector<8xf32>
    %116 = vector.multi_reduction <add>, %115, %cst_70 [1] : vector<8x768xf32> to vector<8xf32>
    %117 = vector.shape_cast %116 : vector<8xf32> to vector<8x1xf32>
    %cst_71 = arith.constant 5.120000e+02 : f32
    %118 = vector.broadcast %cst_71 : f32 to vector<8x1xf32>
    %119 = arith.divf %117, %118 : vector<8x1xf32>
    %120 = arith.mulf %114, %114 : vector<8x1xf32>
    %121 = arith.subf %119, %120 : vector<8x1xf32>
    %cst_72 = arith.constant 9.99999974E-6 : f32
    %122 = vector.broadcast %cst_72 : f32 to vector<8x1xf32>
    %123 = arith.addf %121, %122 : vector<8x1xf32>
    %124 = math.rsqrt %123 : vector<8x1xf32>
    %125 = vector.broadcast %114 : vector<8x1xf32> to vector<8x768xf32>
    %126 = arith.subf %108, %125 : vector<8x768xf32>
    %127 = vector.broadcast %124 : vector<8x1xf32> to vector<8x768xf32>
    %128 = arith.mulf %126, %127 : vector<8x768xf32>
    %cst_73 = arith.constant 0.000000e+00 : f32
    %129 = vector.broadcast %cst_73 : f32 to vector<8x768xf32>
    %130 = arith.maximumf %128, %129 : vector<8x768xf32>
    %c0_74 = arith.constant 0 : index
    %c0_75 = arith.constant 0 : index
    %131 = vector.load %arg3[%c0_74, %c0_75] : memref<8x768xf32, #tpu.memory_space<vmem>>, vector<8x768xf32>
    tpu.vector_store %arg3[%c0_74, %c0_75], %130 {strides = array<i32>} : memref<8x768xf32, #tpu.memory_space<vmem>>, vector<8x768xf32>,
    return
  }
}

</mosaic_0001>

<llo_original>
// kernel: conv_block_forward.1
$region0: #{conv_block_forward.1}
  #allocation0 [shape = 'u32[]', space=smem, size = 0x4, offset = 0x4, fixed_abs, tag = 'smem constant byte address 0x4 - core index']
  #allocation1 [shape = 'u32[144,128]{1,0:T(1,128)}', space=vmem, size = 0x12000, scoped, tag = 'internal scratch']
  #allocation2 [shape = 'f32[8,1024]{1,0:T(8,128)}', space=vmem, size = 0x8000, scoped, tag = 'scratch operand']
  #allocation3 [shape = 'f32[8,1024]{1,0:T(8,128)}', space=vmem, size = 0x8000, scoped, tag = 'scratch operand']
  #allocation4 [shape = 's32[1]{0}', space=sflag, size = 0x4, scoped, tag = 'scratch operand']
  #allocation5 [shape = 's32[]', space=sflag, size = 0x4, offset = 0, fixed_abs, tag = 'sflag constant byte address 0x0 - dummy sync flag']
  %s0 = inlined_call_operand.vmem [shape: f32[8,768], index: 0, kind: input, shape index: {}]
  %s1 = inlined_call_operand.vmem [shape: f32[8,72], index: 1, kind: input, shape index: {}]
  %s2 = inlined_call_operand.vmem [shape: f32[8,72], index: 2, kind: input, shape index: {}]
  %s3 = inlined_call_operand.vmem [shape: f32[8,768], index: 3, kind: output, shape index: {}]
  %s4 = sld [smem:[#allocation0]]
  $region52: #{conv_block_forward.1} parent=0
    _
  %s6 = ssub.s32 1, %s4
  %s7 = scalar_select 0, %s6, %s4
  // Predicated region
  $region2: #{conv_block_forward.1} parent=0 // pred_check
    _
  $region3: #{conv_block_forward.1} parent=0 // pred_check_branch
    %9 = sbr.rel (0) target = $region5
  $region4: #{conv_block_forward.1} parent=0 // pred_region
    _
  $region5: #{conv_block_forward.1} parent=0 // pred_fallthru
    _
  // Predicated region
  $region6: #{conv_block_forward.1} parent=0 // pred_check
    _
  $region7: #{conv_block_forward.1} parent=0 // pred_check_branch
    %11 = sbr.rel (0) target = $region9
  $region8: #{conv_block_forward.1} parent=0 // pred_region
    _
  $region9: #{conv_block_forward.1} parent=0 // pred_fallthru
    _
  %s12 = scalar_lea.vmem [#allocation2], 8
  %p14 = scmp.lt.u32.totalorder 48, 8
  %p15 = pneg %p14
  // Predicated region
  $region10: #{conv_block_forward.1} parent=0 // pred_check
    _
  $region11: #{conv_block_forward.1} parent=0 // pred_check_branch
    %17 = sbr.rel (%p14) target = $region13
  $region12: #{conv_block_forward.1} parent=0 // pred_region
    %s33 = sand.u32 48, 7
    %p34 = scmp.eq.s32.totalorder %s33, 0
    // Predicated region
    $region25: #{conv_block_forward.1} parent=12 // pred_check
      %p35 = pneg %p34
    $region26: #{conv_block_forward.1} parent=12 // pred_check_branch
      %37 = sbr.rel (%p35) target = $region28
    $region27: #{conv_block_forward.1} parent=12 // pred_region
      loop: start=0, step=1, limit=1
      $region29: #{conv_block_forward.1} parent=27 // loop_pre_header
        _
      $region30: #{conv_block_forward.1} parent=27 // loop_header
        %s39 = sphi 0, %s43
        %p40 = scmp.ge.s32.totalorder %s39, 1
        %s44 = sphi %s0, %s0
        %s45 = sphi %s12, %s12
      $region31: #{conv_block_forward.1} parent=27 // loop_header_branch
        %42 = sbr.rel (%p40) target = $region35
      $region32: #{conv_block_forward.1} parent=27 // loop_body
        %v46 = vld [vmem:[%s44] sm:$0xff]
        %47 = vst [vmem:[%s45] sm:$0xff] %v46
        %v48 = vld [vmem:[%s44 + $0x8] sm:$0xff]
        %49 = vst [vmem:[%s45 + $0x8] sm:$0xff] %v48
        %v50 = vld [vmem:[%s44 + $0x10] sm:$0xff]
        %51 = vst [vmem:[%s45 + $0x10] sm:$0xff] %v50
        %v52 = vld [vmem:[%s44 + $0x18] sm:$0xff]
        %53 = vst [vmem:[%s45 + $0x18] sm:$0xff] %v52
        %v54 = vld [vmem:[%s44 + $0x20] sm:$0xff]
        %55 = vst [vmem:[%s45 + $0x20] sm:$0xff] %v54
        %v56 = vld [vmem:[%s44 + $0x28] sm:$0xff]
        %57 = vst [vmem:[%s45 + $0x28] sm:$0xff] %v56
      $region33: #{conv_block_forward.1} parent=27 // loop_footer
        %s43 = sadd.s32 1, %s39
      $region34: #{conv_block_forward.1} parent=27 // loop_footer_branch
        %38 = sbr.rel target = $region30
      $region35: #{conv_block_forward.1} parent=27 // loop_exit
        _
    $region28: #{conv_block_forward.1} parent=12 // pred_fallthru
      _
    %p58 = pneg %p34
    // Predicated region
    $region36: #{conv_block_forward.1} parent=12 // pred_check
      _
    $region37: #{conv_block_forward.1} parent=12 // pred_check_branch
      %60 = sbr.rel (%p34) target = $region39
    $region38: #{conv_block_forward.1} parent=12 // pred_region
      %s61 = sand.u32 48, 7
    $region39: #{conv_block_forward.1} parent=12 // pred_fallthru
      _
  $region13: #{conv_block_forward.1} parent=0 // pred_fallthru
    _
  // Predicated region
  $region14: #{conv_block_forward.1} parent=0 // pred_check
    %p18 = pneg %p14
  $region15: #{conv_block_forward.1} parent=0 // pred_check_branch
    %20 = sbr.rel (%p18) target = $region17
  $region16: #{conv_block_forward.1} parent=0 // pred_region
    %s21 = sshll.u32 1, 48
    %s22 = ssub.s32 %s21, 1
    loop: start=0, step=1, limit=1
    $region18: #{conv_block_forward.1} parent=16 // loop_pre_header
      _
    $region19: #{conv_block_forward.1} parent=16 // loop_header
      %s24 = sphi 0, %s28
      %p25 = scmp.ge.s32.totalorder %s24, 1
      %s29 = sphi %s0, %s0
      %s30 = sphi %s12, %s12
    $region20: #{conv_block_forward.1} parent=16 // loop_header_branch
      %27 = sbr.rel (%p25) target = $region24
    $region21: #{conv_block_forward.1} parent=16 // loop_body
      %v31 = vld [vmem:[%s29] sm:%s22]
      %32 = vst [vmem:[%s30] sm:%s22] %v31
    $region22: #{conv_block_forward.1} parent=16 // loop_footer
      %s28 = sadd.s32 1, %s24
    $region23: #{conv_block_forward.1} parent=16 // loop_footer_branch
      %23 = sbr.rel target = $region19
    $region24: #{conv_block_forward.1} parent=16 // loop_exit
      _
  $region17: #{conv_block_forward.1} parent=0 // pred_fallthru
    _
  // Predicated region
  $region40: #{conv_block_forward.1} parent=0 // pred_check
    _
  $region41: #{conv_block_forward.1} parent=0 // pred_check_branch
    %64 = sbr.rel (0) target = $region43
  $region42: #{conv_block_forward.1} parent=0 // pred_region
    %65 = vsyncadd [#allocation4], 768
  $region43: #{conv_block_forward.1} parent=0 // pred_fallthru
    _
  %66 = vst [vmem:[#allocation2] sm:$0xff] 0.0
  %67 = vst [vmem:[#allocation2 + $0x38] sm:$0xff] 0.0
  %68 = vst [vmem:[#allocation3] sm:$0xff] 0.0
  %69 = vst [vmem:[#allocation3 + $0x38] sm:$0xff] 0.0
  %v70 = vlaneseq
  %v71 = vand.u32 %v70, 127
  %v72 = vadd.s32 %v71, 128
  %v73 = vadd.s32 %v71, 256
  %v74 = vadd.s32 %v71, 384
  %v75 = vadd.s32 %v71, 512
  %v76 = vadd.s32 %v71, 640
  %v77 = vcvt.s32.f32 %v71
  %v78 = vcvt.s32.f32 %v72
  %v79 = vcvt.s32.f32 %v73
  %v80 = vcvt.s32.f32 %v74
  %v81 = vcvt.s32.f32 %v75
  %v82 = vcvt.s32.f32 %v76
  %v83 = vrcp.pop 324.0
  %v84 = vmul.f32 %v77, %v83
  %v85 = vmul.f32 %v78, %v83
  %v86 = vmul.f32 %v79, %v83
  %v87 = vmul.f32 %v80, %v83
  %v88 = vmul.f32 %v81, %v83
  %v89 = vmul.f32 %v82, %v83
  %v90 = vfloor.f32 %v84
  %v91 = vfloor.f32 %v85
  %v92 = vfloor.f32 %v86
  %v93 = vfloor.f32 %v87
  %v94 = vfloor.f32 %v88
  %v95 = vfloor.f32 %v89
  %v96 = vmul.f32 %v90, 324.0
  %v97 = vmul.f32 %v91, 324.0
  %v98 = vmul.f32 %v92, 324.0
  %v99 = vmul.f32 %v93, 324.0
  %v100 = vmul.f32 %v94, 324.0
  %v101 = vmul.f32 %v95, 324.0
  %v102 = vsub.f32 %v77, %v96
  %v103 = vsub.f32 %v78, %v97
  %v104 = vsub.f32 %v79, %v98
  %v105 = vsub.f32 %v80, %v99
  %v106 = vsub.f32 %v81, %v100
  %v107 = vsub.f32 %v82, %v101
  %vm108 = vcmp.lt.f32.partialorder %v102, 0.0
  %vm109 = vcmp.lt.f32.partialorder %v103, 0.0
  %vm110 = vcmp.lt.f32.partialorder %v104, 0.0
  %vm111 = vcmp.lt.f32.partialorder %v105, 0.0
  %vm112 = vcmp.lt.f32.partialorder %v106, 0.0
  %vm113 = vcmp.lt.f32.partialorder %v107, 0.0
  %v114 = vadd.f32 %v102, 324.0
  %v115 = vadd.f32 %v103, 324.0
  %v116 = vadd.f32 %v104, 324.0
  %v117 = vadd.f32 %v105, 324.0
  %v118 = vadd.f32 %v106, 324.0
  %v119 = vadd.f32 %v107, 324.0
  %v120 = vsel %vm108, %v114, %v102
  %v121 = vsel %vm109, %v115, %v103
  %v122 = vsel %vm110, %v116, %v104
  %v123 = vsel %vm111, %v117, %v105
  %v124 = vsel %vm112, %v118, %v106
  %v125 = vsel %vm113, %v119, %v107
  %vm126 = vcmp.ge.f32.partialorder %v120, 324.0
  %vm127 = vcmp.ge.f32.partialorder %v121, 324.0
  %vm128 = vcmp.ge.f32.partialorder %v122, 324.0
  %vm129 = vcmp.ge.f32.partialorder %v123, 324.0
  %vm130 = vcmp.ge.f32.partialorder %v124, 324.0
  %vm131 = vcmp.ge.f32.partialorder %v125, 324.0
  %v132 = vsub.f32 %v120, 324.0
  %v133 = vsub.f32 %v121, 324.0
  %v134 = vsub.f32 %v122, 324.0
  %v135 = vsub.f32 %v123, 324.0
  %v136 = vsub.f32 %v124, 324.0
  %v137 = vsub.f32 %v125, 324.0
  %v138 = vsel %vm126, %v132, %v120
  %v139 = vsel %vm127, %v133, %v121
  %v140 = vsel %vm128, %v134, %v122
  %v141 = vsel %vm129, %v135, %v123
  %v142 = vsel %vm130, %v136, %v124
  %v143 = vsel %vm131, %v137, %v125
  %v144 = vrcp.pop 18.0
  %v145 = vmul.f32 %v138, %v144
  %v146 = vmul.f32 %v139, %v144
  %v147 = vmul.f32 %v140, %v144
  %v148 = vmul.f32 %v141, %v144
  %v149 = vmul.f32 %v142, %v144
  %v150 = vmul.f32 %v143, %v144
  %v151 = vfloor.f32 %v145
  %v152 = vfloor.f32 %v146
  %v153 = vfloor.f32 %v147
  %v154 = vfloor.f32 %v148
  %v155 = vfloor.f32 %v149
  %v156 = vfloor.f32 %v150
  %v157 = vmul.f32 %v151, 18.0
  %v158 = vmul.f32 %v152, 18.0
  %v159 = vmul.f32 %v153, 18.0
  %v160 = vmul.f32 %v154, 18.0
  %v161 = vmul.f32 %v155, 18.0
  %v162 = vmul.f32 %v156, 18.0
  %v163 = vsub.f32 %v138, %v157
  %v164 = vsub.f32 %v139, %v158
  %v165 = vsub.f32 %v140, %v159
  %v166 = vsub.f32 %v141, %v160
  %v167 = vsub.f32 %v142, %v161
  %v168 = vsub.f32 %v143, %v162
  %vm169 = vcmp.lt.f32.partialorder %v163, 0.0
  %vm170 = vcmp.lt.f32.partialorder %v164, 0.0
  %vm171 = vcmp.lt.f32.partialorder %v165, 0.0
  %vm172 = vcmp.lt.f32.partialorder %v166, 0.0
  %vm173 = vcmp.lt.f32.partialorder %v167, 0.0
  %vm174 = vcmp.lt.f32.partialorder %v168, 0.0
  %v175 = vadd.f32 %v163, 18.0
  %v176 = vadd.f32 %v164, 18.0
  %v177 = vadd.f32 %v165, 18.0
  %v178 = vadd.f32 %v166, 18.0
  %v179 = vadd.f32 %v167, 18.0
  %v180 = vadd.f32 %v168, 18.0
  %v181 = vsel %vm169, %v175, %v163
  %v182 = vsel %vm170, %v176, %v164
  %v183 = vsel %vm171, %v177, %v165
  %v184 = vsel %vm172, %v178, %v166
  %v185 = vsel %vm173, %v179, %v167
  %v186 = vsel %vm174, %v180, %v168
  %vm187 = vcmp.ge.f32.partialorder %v181, 18.0
  %vm188 = vcmp.ge.f32.partialorder %v182, 18.0
  %vm189 = vcmp.ge.f32.partialorder %v183, 18.0
  %vm190 = vcmp.ge.f32.partialorder %v184, 18.0
  %vm191 = vcmp.ge.f32.partialorder %v185, 18.0
  %vm192 = vcmp.ge.f32.partialorder %v186, 18.0
  %v193 = vsub.f32 %v181, 18.0
  %v194 = vsub.f32 %v182, 18.0
  %v195 = vsub.f32 %v183, 18.0
  %v196 = vsub.f32 %v184, 18.0
  %v197 = vsub.f32 %v185, 18.0
  %v198 = vsub.f32 %v186, 18.0
  %v199 = vsel %vm187, %v193, %v181
  %v200 = vsel %vm188, %v194, %v182
  %v201 = vsel %vm189, %v195, %v183
  %v202 = vsel %vm190, %v196, %v184
  %v203 = vsel %vm191, %v197, %v185
  %v204 = vsel %vm192, %v198, %v186
  %vm205 = vcmp.ge.f32.partialorder %v138, 18.0
  %vm206 = vcmp.ge.f32.partialorder %v139, 18.0
  %vm207 = vcmp.ge.f32.partialorder %v140, 18.0
  %vm208 = vcmp.ge.f32.partialorder %v141, 18.0
  %vm209 = vcmp.ge.f32.partialorder %v142, 18.0
  %vm210 = vcmp.ge.f32.partialorder %v143, 18.0
  %vm211 = vcmp.lt.f32.partialorder %v138, 306.0
  %vm212 = vcmp.lt.f32.partialorder %v139, 306.0
  %vm213 = vcmp.lt.f32.partialorder %v140, 306.0
  %vm214 = vcmp.lt.f32.partialorder %v141, 306.0
  %vm215 = vcmp.lt.f32.partialorder %v142, 306.0
  %vm216 = vcmp.lt.f32.partialorder %v143, 306.0
  %vm217 = vmand %vm205, %vm211
  %vm218 = vmand %vm206, %vm212
  %vm219 = vmand %vm207, %vm213
  %vm220 = vmand %vm208, %vm214
  %vm221 = vmand %vm209, %vm215
  %vm222 = vmand %vm210, %vm216
  %vm223 = vcmp.ge.f32.partialorder %v199, 1.0
  %vm224 = vcmp.ge.f32.partialorder %v200, 1.0
  %vm225 = vcmp.ge.f32.partialorder %v201, 1.0
  %vm226 = vcmp.ge.f32.partialorder %v202, 1.0
  %vm227 = vcmp.ge.f32.partialorder %v203, 1.0
  %vm228 = vcmp.ge.f32.partialorder %v204, 1.0
  %vm229 = vcmp.le.f32.partialorder %v199, 16.0
  %vm230 = vcmp.le.f32.partialorder %v200, 16.0
  %vm231 = vcmp.le.f32.partialorder %v201, 16.0
  %vm232 = vcmp.le.f32.partialorder %v202, 16.0
  %vm233 = vcmp.le.f32.partialorder %v203, 16.0
  %vm234 = vcmp.le.f32.partialorder %v204, 16.0
  %vm235 = vmand %vm223, %vm229
  %vm236 = vmand %vm224, %vm230
  %vm237 = vmand %vm225, %vm231
  %vm238 = vmand %vm226, %vm232
  %vm239 = vmand %vm227, %vm233
  %vm240 = vmand %vm228, %vm234
  %vm241 = vcmp.lt.s32.totalorder %v71, 648
  %vm242 = vcmp.lt.s32.totalorder %v72, 648
  %vm243 = vcmp.lt.s32.totalorder %v73, 648
  %vm244 = vcmp.lt.s32.totalorder %v74, 648
  %vm245 = vcmp.lt.s32.totalorder %v75, 648
  %vm246 = vcmp.lt.s32.totalorder %v76, 648
  %vm247 = vmand %vm241, %vm217
  %vm248 = vmand %vm242, %vm218
  %vm249 = vmand %vm243, %vm219
  %vm250 = vmand %vm244, %vm220
  %vm251 = vmand %vm245, %vm221
  %vm252 = vmand %vm246, %vm222
  %vm253 = vmand %vm247, %vm235
  %vm254 = vmand %vm248, %vm236
  %vm255 = vmand %vm249, %vm237
  %vm256 = vmand %vm250, %vm238
  %vm257 = vmand %vm251, %vm239
  %vm258 = vmand %vm252, %vm240
  %v259 = vsel %vm253, 1, 0
  %v260 = vsel %vm254, 1, 0
  %v261 = vsel %vm255, 1, 0
  %v262 = vsel %vm256, 1, 0
  %v263 = vsel %vm257, 1, 0
  %v264 = vsel %vm258, 1, 0
  %v265 = vcvt.s32.f32 %v259
  %v266 = vcvt.s32.f32 %v260
  %v267 = vcvt.s32.f32 %v261
  %v268 = vcvt.s32.f32 %v262
  %v269 = vcvt.s32.f32 %v263
  %v270 = vcvt.s32.f32 %v264
  %s271 = smul.u32 8, 1
  %s272 = smul.u32 %s271, 6
  %s273 = sshll.u32 %s272, 4
  %274 = dma.done [#allocation4], %s273
  %v275 = vld [vmem:[#allocation2] sm:$0xff]
  %v276 = vld [vmem:[#allocation2 + $0x8] sm:$0xff]
  %v277 = vld [vmem:[#allocation2 + $0x10] sm:$0xff]
  %v278 = vld [vmem:[#allocation2 + $0x18] sm:$0xff]
  %v279 = vld [vmem:[#allocation2 + $0x20] sm:$0xff]
  %v280 = vld [vmem:[#allocation2 + $0x28] sm:$0xff]
  %v281 = vld [vmem:[#allocation2 + $0x30] sm:$0xff]
  %v282 = vld [vmem:[#allocation2 + $0x8] sm:$0xff]
  %v283 = vld [vmem:[#allocation2 + $0x10] sm:$0xff]
  %v284 = vld [vmem:[#allocation2 + $0x18] sm:$0xff]
  %v285 = vld [vmem:[#allocation2 + $0x20] sm:$0xff]
  %v286 = vld [vmem:[#allocation2 + $0x28] sm:$0xff]
  %v287 = vld [vmem:[#allocation2 + $0x30] sm:$0xff]
  %v288 = vld [vmem:[#allocation2 + $0x38] sm:$0xff]
  %296 = vrot.lane.b32.xlu0 %v275, 127
  %v297 = vpop.permute.xlu0 %296
  %298 = vrot.lane.b32.xlu0 %v276, 127
  %v299 = vpop.permute.xlu0 %298
  %300 = vrot.lane.b32.xlu0 %v277, 127
  %v301 = vpop.permute.xlu0 %300
  %302 = vrot.lane.b32.xlu0 %v278, 127
  %v303 = vpop.permute.xlu0 %302
  %304 = vrot.lane.b32.xlu0 %v279, 127
  %v305 = vpop.permute.xlu0 %304
  %306 = vrot.lane.b32.xlu0 %v280, 127
  %v307 = vpop.permute.xlu0 %306
  %308 = vrot.lane.b32.xlu0 %v281, 127
  %v309 = vpop.permute.xlu0 %308
  %vm310 = vcmask 1039360
  %v311 = vsel %vm310, %v297, %v299
  %v312 = vsel %vm310, %v299, %v301
  %v313 = vsel %vm310, %v301, %v303
  %v314 = vsel %vm310, %v303, %v305
  %v315 = vsel %vm310, %v305, %v307
  %v316 = vsel %vm310, %v307, %v309
  %317 = vrot.lane.b32.xlu0 %v275, 126
  %v318 = vpop.permute.xlu0 %317
  %319 = vrot.lane.b32.xlu0 %v276, 126
  %v320 = vpop.permute.xlu0 %319
  %321 = vrot.lane.b32.xlu0 %v277, 126
  %v322 = vpop.permute.xlu0 %321
  %323 = vrot.lane.b32.xlu0 %v278, 126
  %v324 = vpop.permute.xlu0 %323
  %325 = vrot.lane.b32.xlu0 %v279, 126
  %v326 = vpop.permute.xlu0 %325
  %327 = vrot.lane.b32.xlu0 %v280, 126
  %v328 = vpop.permute.xlu0 %327
  %329 = vrot.lane.b32.xlu0 %v281, 126
  %v330 = vpop.permute.xlu0 %329
  %vm331 = vcmask 1031168
  %v332 = vsel %vm331, %v318, %v320
  %v333 = vsel %vm331, %v320, %v322
  %v334 = vsel %vm331, %v322, %v324
  %v335 = vsel %vm331, %v324, %v326
  %v336 = vsel %vm331, %v326, %v328
  %v337 = vsel %vm331, %v328, %v330
  %338 = vrot.lane.b32.xlu0 %v275, 110
  %v339 = vpop.permute.xlu0 %338
  %340 = vrot.lane.b32.xlu0 %v276, 110
  %v341 = vpop.permute.xlu0 %340
  %342 = vrot.lane.b32.xlu0 %v277, 110
  %v343 = vpop.permute.xlu0 %342
  %344 = vrot.lane.b32.xlu0 %v278, 110
  %v345 = vpop.permute.xlu0 %344
  %346 = vrot.lane.b32.xlu0 %v279, 110
  %v347 = vpop.permute.xlu0 %346
  %348 = vrot.lane.b32.xlu0 %v280, 110
  %v349 = vpop.permute.xlu0 %348
  %350 = vrot.lane.b32.xlu0 %v281, 110
  %v351 = vpop.permute.xlu0 %350
  %vm352 = vcmask 900096
  %v353 = vsel %vm352, %v339, %v341
  %v354 = vsel %vm352, %v341, %v343
  %v355 = vsel %vm352, %v343, %v345
  %v356 = vsel %vm352, %v345, %v347
  %v357 = vsel %vm352, %v347, %v349
  %v358 = vsel %vm352, %v349, %v351
  %359 = vrot.lane.b32.xlu0 %v276, 109
  %v360 = vpop.permute.xlu0 %359
  %361 = vrot.lane.b32.xlu0 %v277, 109
  %v362 = vpop.permute.xlu0 %361
  %363 = vrot.lane.b32.xlu0 %v278, 109
  %v364 = vpop.permute.xlu0 %363
  %365 = vrot.lane.b32.xlu0 %v279, 109
  %v366 = vpop.permute.xlu0 %365
  %367 = vrot.lane.b32.xlu0 %v280, 109
  %v368 = vpop.permute.xlu0 %367
  %369 = vrot.lane.b32.xlu0 %v281, 109
  %v370 = vpop.permute.xlu0 %369
  %vm371 = vcmask 891904
  %v372 = vsel %vm371, %v360, %v362
  %v373 = vsel %vm371, %v362, %v364
  %v374 = vsel %vm371, %v364, %v366
  %v375 = vsel %vm371, %v366, %v368
  %v376 = vsel %vm371, %v368, %v370
  %384 = vrot.lane.b32.xlu0 %v282, 108
  %v385 = vpop.permute.xlu0 %384
  %386 = vrot.lane.b32.xlu0 %v283, 108
  %v387 = vpop.permute.xlu0 %386
  %388 = vrot.lane.b32.xlu0 %v284, 108
  %v389 = vpop.permute.xlu0 %388
  %390 = vrot.lane.b32.xlu0 %v285, 108
  %v391 = vpop.permute.xlu0 %390
  %392 = vrot.lane.b32.xlu0 %v286, 108
  %v393 = vpop.permute.xlu0 %392
  %394 = vrot.lane.b32.xlu0 %v287, 108
  %v395 = vpop.permute.xlu0 %394
  %396 = vrot.lane.b32.xlu0 %v288, 108
  %v397 = vpop.permute.xlu0 %396
  %vm398 = vcmask 883712
  %v399 = vsel %vm398, %v385, %v387
  %v400 = vsel %vm398, %v387, %v389
  %v401 = vsel %vm398, %v389, %v391
  %v402 = vsel %vm398, %v391, %v393
  %v403 = vsel %vm398, %v393, %v395
  %v404 = vsel %vm398, %v395, %v397
  %405 = vrot.lane.b32.xlu0 %v282, 92
  %v406 = vpop.permute.xlu0 %405
  %407 = vrot.lane.b32.xlu0 %v283, 92
  %v408 = vpop.permute.xlu0 %407
  %409 = vrot.lane.b32.xlu0 %v284, 92
  %v410 = vpop.permute.xlu0 %409
  %411 = vrot.lane.b32.xlu0 %v285, 92
  %v412 = vpop.permute.xlu0 %411
  %413 = vrot.lane.b32.xlu0 %v286, 92
  %v414 = vpop.permute.xlu0 %413
  %415 = vrot.lane.b32.xlu0 %v287, 92
  %v416 = vpop.permute.xlu0 %415
  %417 = vrot.lane.b32.xlu0 %v288, 92
  %v418 = vpop.permute.xlu0 %417
  %vm419 = vcmask 752640
  %v420 = vsel %vm419, %v406, %v408
  %v421 = vsel %vm419, %v408, %v410
  %v422 = vsel %vm419, %v410, %v412
  %v423 = vsel %vm419, %v412, %v414
  %v424 = vsel %vm419, %v414, %v416
  %v425 = vsel %vm419, %v416, %v418
  %426 = vrot.lane.b32.xlu0 %v282, 91
  %v427 = vpop.permute.xlu0 %426
  %428 = vrot.lane.b32.xlu0 %v283, 91
  %v429 = vpop.permute.xlu0 %428
  %430 = vrot.lane.b32.xlu0 %v284, 91
  %v431 = vpop.permute.xlu0 %430
  %432 = vrot.lane.b32.xlu0 %v285, 91
  %v433 = vpop.permute.xlu0 %432
  %434 = vrot.lane.b32.xlu0 %v286, 91
  %v435 = vpop.permute.xlu0 %434
  %436 = vrot.lane.b32.xlu0 %v287, 91
  %v437 = vpop.permute.xlu0 %436
  %438 = vrot.lane.b32.xlu0 %v288, 91
  %v439 = vpop.permute.xlu0 %438
  %vm440 = vcmask 744448
  %v441 = vsel %vm440, %v427, %v429
  %v442 = vsel %vm440, %v429, %v431
  %v443 = vsel %vm440, %v431, %v433
  %v444 = vsel %vm440, %v433, %v435
  %v445 = vsel %vm440, %v435, %v437
  %v446 = vsel %vm440, %v437, %v439
  %447 = vrot.lane.b32.xlu0 %v282, 90
  %v448 = vpop.permute.xlu0 %447
  %449 = vrot.lane.b32.xlu0 %v283, 90
  %v450 = vpop.permute.xlu0 %449
  %451 = vrot.lane.b32.xlu0 %v284, 90
  %v452 = vpop.permute.xlu0 %451
  %453 = vrot.lane.b32.xlu0 %v285, 90
  %v454 = vpop.permute.xlu0 %453
  %455 = vrot.lane.b32.xlu0 %v286, 90
  %v456 = vpop.permute.xlu0 %455
  %457 = vrot.lane.b32.xlu0 %v287, 90
  %v458 = vpop.permute.xlu0 %457
  %459 = vrot.lane.b32.xlu0 %v288, 90
  %v460 = vpop.permute.xlu0 %459
  %vm461 = vcmask 736256
  %v462 = vsel %vm461, %v448, %v450
  %v463 = vsel %vm461, %v450, %v452
  %v464 = vsel %vm461, %v452, %v454
  %v465 = vsel %vm461, %v454, %v456
  %v466 = vsel %vm461, %v456, %v458
  %v467 = vsel %vm461, %v458, %v460
  %v468 = vld [vmem:[%s1] sm:$0xff]
  %469 = vrot.lane.b32.xlu0 %v275, 19
  %v470 = vpop.permute.xlu0 %469
  %471 = vrot.lane.b32.xlu0 %v276, 19
  %v472 = vpop.permute.xlu0 %471
  %473 = vrot.lane.b32.xlu0 %v277, 19
  %v474 = vpop.permute.xlu0 %473
  %475 = vrot.lane.b32.xlu0 %v278, 19
  %v476 = vpop.permute.xlu0 %475
  %477 = vrot.lane.b32.xlu0 %v279, 19
  %v478 = vpop.permute.xlu0 %477
  %479 = vrot.lane.b32.xlu0 %v280, 19
  %v480 = vpop.permute.xlu0 %479
  %481 = vrot.lane.b32.xlu0 %v281, 19
  %v482 = vpop.permute.xlu0 %481
  %483 = vrot.lane.b32.xlu0 %v311, 19
  %v484 = vpop.permute.xlu0 %483
  %485 = vrot.lane.b32.xlu0 %v312, 19
  %v486 = vpop.permute.xlu0 %485
  %487 = vrot.lane.b32.xlu0 %v313, 19
  %v488 = vpop.permute.xlu0 %487
  %489 = vrot.lane.b32.xlu0 %v314, 19
  %v490 = vpop.permute.xlu0 %489
  %491 = vrot.lane.b32.xlu0 %v315, 19
  %v492 = vpop.permute.xlu0 %491
  %493 = vrot.lane.b32.xlu0 %v316, 19
  %v494 = vpop.permute.xlu0 %493
  %495 = vrot.lane.b32.xlu0 %v309, 19
  %v496 = vpop.permute.xlu0 %495
  %497 = vrot.lane.b32.xlu0 %v332, 19
  %v498 = vpop.permute.xlu0 %497
  %499 = vrot.lane.b32.xlu0 %v333, 19
  %v500 = vpop.permute.xlu0 %499
  %501 = vrot.lane.b32.xlu0 %v334, 19
  %v502 = vpop.permute.xlu0 %501
  %503 = vrot.lane.b32.xlu0 %v335, 19
  %v504 = vpop.permute.xlu0 %503
  %505 = vrot.lane.b32.xlu0 %v336, 19
  %v506 = vpop.permute.xlu0 %505
  %507 = vrot.lane.b32.xlu0 %v337, 19
  %v508 = vpop.permute.xlu0 %507
  %509 = vrot.lane.b32.xlu0 %v330, 19
  %v510 = vpop.permute.xlu0 %509
  %511 = vrot.lane.b32.xlu0 %v353, 19
  %v512 = vpop.permute.xlu0 %511
  %513 = vrot.lane.b32.xlu0 %v354, 19
  %v514 = vpop.permute.xlu0 %513
  %515 = vrot.lane.b32.xlu0 %v355, 19
  %v516 = vpop.permute.xlu0 %515
  %517 = vrot.lane.b32.xlu0 %v356, 19
  %v518 = vpop.permute.xlu0 %517
  %519 = vrot.lane.b32.xlu0 %v357, 19
  %v520 = vpop.permute.xlu0 %519
  %521 = vrot.lane.b32.xlu0 %v358, 19
  %v522 = vpop.permute.xlu0 %521
  %523 = vrot.lane.b32.xlu0 %v351, 19
  %v524 = vpop.permute.xlu0 %523
  %525 = vrot.lane.b32.xlu0 %v360, 19
  %v526 = vpop.permute.xlu0 %525
  %527 = vrot.lane.b32.xlu0 %v372, 19
  %v528 = vpop.permute.xlu0 %527
  %529 = vrot.lane.b32.xlu0 %v373, 19
  %v530 = vpop.permute.xlu0 %529
  %531 = vrot.lane.b32.xlu0 %v374, 19
  %v532 = vpop.permute.xlu0 %531
  %533 = vrot.lane.b32.xlu0 %v375, 19
  %v534 = vpop.permute.xlu0 %533
  %535 = vrot.lane.b32.xlu0 %v376, 19
  %v536 = vpop.permute.xlu0 %535
  %537 = vrot.lane.b32.xlu0 %v370, 19
  %v538 = vpop.permute.xlu0 %537
  %539 = vrot.lane.b32.xlu0 %v385, 19
  %v540 = vpop.permute.xlu0 %539
  %541 = vrot.lane.b32.xlu0 %v399, 19
  %v542 = vpop.permute.xlu0 %541
  %543 = vrot.lane.b32.xlu0 %v400, 19
  %v544 = vpop.permute.xlu0 %543
  %545 = vrot.lane.b32.xlu0 %v401, 19
  %v546 = vpop.permute.xlu0 %545
  %547 = vrot.lane.b32.xlu0 %v402, 19
  %v548 = vpop.permute.xlu0 %547
  %549 = vrot.lane.b32.xlu0 %v403, 19
  %v550 = vpop.permute.xlu0 %549
  %551 = vrot.lane.b32.xlu0 %v404, 19
  %v552 = vpop.permute.xlu0 %551
  %553 = vrot.lane.b32.xlu0 %v406, 19
  %v554 = vpop.permute.xlu0 %553
  %555 = vrot.lane.b32.xlu0 %v420, 19
  %v556 = vpop.permute.xlu0 %555
  %557 = vrot.lane.b32.xlu0 %v421, 19
  %v558 = vpop.permute.xlu0 %557
  %559 = vrot.lane.b32.xlu0 %v422, 19
  %v560 = vpop.permute.xlu0 %559
  %561 = vrot.lane.b32.xlu0 %v423, 19
  %v562 = vpop.permute.xlu0 %561
  %563 = vrot.lane.b32.xlu0 %v424, 19
  %v564 = vpop.permute.xlu0 %563
  %565 = vrot.lane.b32.xlu0 %v425, 19
  %v566 = vpop.permute.xlu0 %565
  %567 = vrot.lane.b32.xlu0 %v427, 19
  %v568 = vpop.permute.xlu0 %567
  %569 = vrot.lane.b32.xlu0 %v441, 19
  %v570 = vpop.permute.xlu0 %569
  %571 = vrot.lane.b32.xlu0 %v442, 19
  %v572 = vpop.permute.xlu0 %571
  %573 = vrot.lane.b32.xlu0 %v443, 19
  %v574 = vpop.permute.xlu0 %573
  %575 = vrot.lane.b32.xlu0 %v444, 19
  %v576 = vpop.permute.xlu0 %575
  %577 = vrot.lane.b32.xlu0 %v445, 19
  %v578 = vpop.permute.xlu0 %577
  %579 = vrot.lane.b32.xlu0 %v446, 19
  %v580 = vpop.permute.xlu0 %579
  %581 = vrot.lane.b32.xlu0 %v448, 19
  %v582 = vpop.permute.xlu0 %581
  %583 = vrot.lane.b32.xlu0 %v462, 19
  %v584 = vpop.permute.xlu0 %583
  %585 = vrot.lane.b32.xlu0 %v463, 19
  %v586 = vpop.permute.xlu0 %585
  %587 = vrot.lane.b32.xlu0 %v464, 19
  %v588 = vpop.permute.xlu0 %587
  %589 = vrot.lane.b32.xlu0 %v465, 19
  %v590 = vpop.permute.xlu0 %589
  %591 = vrot.lane.b32.xlu0 %v466, 19
  %v592 = vpop.permute.xlu0 %591
  %593 = vrot.lane.b32.xlu0 %v467, 19
  %v594 = vpop.permute.xlu0 %593
  %vm595 = vcmask 154624
  %v596 = vsel %vm595, %v470, %v472
  %v597 = vsel %vm595, %v472, %v474
  %v598 = vsel %vm595, %v474, %v476
  %v599 = vsel %vm595, %v476, %v478
  %v600 = vsel %vm595, %v478, %v480
  %v601 = vsel %vm595, %v480, %v482
  %v602 = vsel %vm595, %v484, %v486
  %v603 = vsel %vm595, %v486, %v488
  %v604 = vsel %vm595, %v488, %v490
  %v605 = vsel %vm595, %v490, %v492
  %v606 = vsel %vm595, %v492, %v494
  %v607 = vsel %vm595, %v494, %v496
  %v608 = vsel %vm595, %v498, %v500
  %v609 = vsel %vm595, %v500, %v502
  %v610 = vsel %vm595, %v502, %v504
  %v611 = vsel %vm595, %v504, %v506
  %v612 = vsel %vm595, %v506, %v508
  %v613 = vsel %vm595, %v508, %v510
  %v614 = vsel %vm595, %v512, %v514
  %v615 = vsel %vm595, %v514, %v516
  %v616 = vsel %vm595, %v516, %v518
  %v617 = vsel %vm595, %v518, %v520
  %v618 = vsel %vm595, %v520, %v522
  %v619 = vsel %vm595, %v522, %v524
  %v620 = vsel %vm595, %v526, %v528
  %v621 = vsel %vm595, %v528, %v530
  %v622 = vsel %vm595, %v530, %v532
  %v623 = vsel %vm595, %v532, %v534
  %v624 = vsel %vm595, %v534, %v536
  %v625 = vsel %vm595, %v536, %v538
  %v626 = vsel %vm595, %v540, %v542
  %v627 = vsel %vm595, %v542, %v544
  %v628 = vsel %vm595, %v544, %v546
  %v629 = vsel %vm595, %v546, %v548
  %v630 = vsel %vm595, %v548, %v550
  %v631 = vsel %vm595, %v550, %v552
  %v632 = vsel %vm595, %v554, %v556
  %v633 = vsel %vm595, %v556, %v558
  %v634 = vsel %vm595, %v558, %v560
  %v635 = vsel %vm595, %v560, %v562
  %v636 = vsel %vm595, %v562, %v564
  %v637 = vsel %vm595, %v564, %v566
  %v638 = vsel %vm595, %v568, %v570
  %v639 = vsel %vm595, %v570, %v572
  %v640 = vsel %vm595, %v572, %v574
  %v641 = vsel %vm595, %v574, %v576
  %v642 = vsel %vm595, %v576, %v578
  %v643 = vsel %vm595, %v578, %v580
  %v644 = vsel %vm595, %v582, %v584
  %v645 = vsel %vm595, %v584, %v586
  %v646 = vsel %vm595, %v586, %v588
  %v647 = vsel %vm595, %v588, %v590
  %v648 = vsel %vm595, %v590, %v592
  %v649 = vsel %vm595, %v592, %v594
  %vm704 = vcmask 588800
  %v706 = vsel %vm704, %v468, 0
  %708 = vmatprep.subr.mxu0 0.0
  %709 = vmatpush1.msra.mxu0 0.0
  %710 = vmatprep.subr.mxu0 0.0
  %711 = vmatpush1.msra.mxu0 0.0
  %712 = vmatprep.subr.mxu0 0.0
  %713 = vmatpush1.msra.mxu0 0.0
  %714 = vmatprep.subr.mxu0 0.0
  %715 = vmatpush1.msra.mxu0 0.0
  %716 = vmatprep.subr.mxu0 0.0
  %717 = vmatpush1.msra.mxu0 0.0
  %718 = vmatprep.subr.mxu0 0.0
  %719 = vmatpush1.msra.mxu0 0.0
  %720 = vmatprep.subr.mxu0 0.0
  %721 = vmatpush1.msra.mxu0 0.0
  %722 = vmatprep.subr.mxu0 %v645
  %723 = vmatpush1.msra.mxu0 %v644
  %724 = vmatprep.subr.mxu0 %v639
  %725 = vmatpush1.msra.mxu0 %v638
  %726 = vmatprep.subr.mxu0 %v633
  %727 = vmatpush1.msra.mxu0 %v632
  %728 = vmatprep.subr.mxu0 %v627
  %729 = vmatpush1.msra.mxu0 %v626
  %730 = vmatprep.subr.mxu0 %v621
  %731 = vmatpush1.msra.mxu0 %v620
  %732 = vmatprep.subr.mxu0 %v615
  %733 = vmatpush1.msra.mxu0 %v614
  %734 = vmatprep.subr.mxu0 %v609
  %735 = vmatpush1.msra.mxu0 %v608
  %736 = vmatprep.subr.mxu0 %v603
  %737 = vmatpush1.msra.mxu0 %v602
  %738 = vmatprep.subr.mxu0 %v597
  %739 = vmatpush1.msra.mxu0 %v596
  %740 = vmatprep.subr.mxu0 0.0
  %741 = vmatpush2.msra.mxu0 0.0
  %742 = vmatprep.subr.mxu0 0.0
  %743 = vmatpush2.msra.mxu0 0.0
  %744 = vmatprep.subr.mxu0 0.0
  %745 = vmatpush2.msra.mxu0 0.0
  %746 = vmatprep.subr.mxu0 0.0
  %747 = vmatpush2.msra.mxu0 0.0
  %748 = vmatprep.subr.mxu0 0.0
  %749 = vmatpush2.msra.mxu0 0.0
  %750 = vmatprep.subr.mxu0 0.0
  %751 = vmatpush2.msra.mxu0 0.0
  %752 = vmatprep.subr.mxu0 0.0
  %753 = vmatpush2.msra.mxu0 0.0
  %754 = vmatprep.subr.mxu0 0.0
  %755 = vmatpush2.msra.mxu0 0.0
  %756 = vmatprep.subr.mxu0 0.0
  %757 = vmatpush2.msra.mxu0 0.0
  %758 = vmatprep.subr.mxu0 0.0
  %759 = vmatpush2.msra.mxu0 0.0
  %760 = vmatprep.subr.mxu0 0.0
  %761 = vmatpush2.msra.mxu0 0.0
  %762 = vmatprep.subr.mxu0 0.0
  %763 = vmatpush2.msra.mxu0 0.0
  %764 = vmatprep.subr.mxu0 0.0
  %765 = vmatpush2.msra.mxu0 0.0
  %766 = vmatprep.subr.mxu0 0.0
  %767 = vmatpush2.msra.mxu0 0.0
  %768 = vmatprep.subr.mxu0 0.0
  %769 = vmatpush2.msra.mxu0 0.0
  %770 = vmatprep.subr.mxu0 0.0
  %771 = vmatpush2.msra.mxu0 0.0
  %772 = vmatprep.mubr.f32.mxu0 0.0
  %773 = vmatmul.mubr.f32.gmra.mxu0 %v706
  %v774 = vpop.f32.mrf.mxu0
  %v775 = vadd.f32 0.0, %v774
  %v776 = vpop.f32.mrf.mxu0
  %v777 = vadd.f32 0.0, %v776
  %778 = vdwg.mxu0
  %779 = vmatprep.subr.mxu0 0.0
  %780 = vmatpush1.msra.mxu0 0.0
  %781 = vmatprep.subr.mxu0 0.0
  %782 = vmatpush1.msra.mxu0 0.0
  %783 = vmatprep.subr.mxu0 0.0
  %784 = vmatpush1.msra.mxu0 0.0
  %785 = vmatprep.subr.mxu0 0.0
  %786 = vmatpush1.msra.mxu0 0.0
  %787 = vmatprep.subr.mxu0 0.0
  %788 = vmatpush1.msra.mxu0 0.0
  %789 = vmatprep.subr.mxu0 0.0
  %790 = vmatpush1.msra.mxu0 0.0
  %791 = vmatprep.subr.mxu0 0.0
  %792 = vmatpush1.msra.mxu0 0.0
  %793 = vmatprep.subr.mxu0 %v647
  %794 = vmatpush1.msra.mxu0 %v646
  %795 = vmatprep.subr.mxu0 %v641
  %796 = vmatpush1.msra.mxu0 %v640
  %797 = vmatprep.subr.mxu0 %v635
  %798 = vmatpush1.msra.mxu0 %v634
  %799 = vmatprep.subr.mxu0 %v629
  %800 = vmatpush1.msra.mxu0 %v628
  %801 = vmatprep.subr.mxu0 %v623
  %802 = vmatpush1.msra.mxu0 %v622
  %803 = vmatprep.subr.mxu0 %v617
  %804 = vmatpush1.msra.mxu0 %v616
  %805 = vmatprep.subr.mxu0 %v611
  %806 = vmatpush1.msra.mxu0 %v610
  %807 = vmatprep.subr.mxu0 %v605
  %808 = vmatpush1.msra.mxu0 %v604
  %809 = vmatprep.subr.mxu0 %v599
  %810 = vmatpush1.msra.mxu0 %v598
  %811 = vmatprep.subr.mxu0 0.0
  %812 = vmatpush2.msra.mxu0 0.0
  %813 = vmatprep.subr.mxu0 0.0
  %814 = vmatpush2.msra.mxu0 0.0
  %815 = vmatprep.subr.mxu0 0.0
  %816 = vmatpush2.msra.mxu0 0.0
  %817 = vmatprep.subr.mxu0 0.0
  %818 = vmatpush2.msra.mxu0 0.0
  %819 = vmatprep.subr.mxu0 0.0
  %820 = vmatpush2.msra.mxu0 0.0
  %821 = vmatprep.subr.mxu0 0.0
  %822 = vmatpush2.msra.mxu0 0.0
  %823 = vmatprep.subr.mxu0 0.0
  %824 = vmatpush2.msra.mxu0 0.0
  %825 = vmatprep.subr.mxu0 0.0
  %826 = vmatpush2.msra.mxu0 0.0
  %827 = vmatprep.subr.mxu0 0.0
  %828 = vmatpush2.msra.mxu0 0.0
  %829 = vmatprep.subr.mxu0 0.0
  %830 = vmatpush2.msra.mxu0 0.0
  %831 = vmatprep.subr.mxu0 0.0
  %832 = vmatpush2.msra.mxu0 0.0
  %833 = vmatprep.subr.mxu0 0.0
  %834 = vmatpush2.msra.mxu0 0.0
  %835 = vmatprep.subr.mxu0 0.0
  %836 = vmatpush2.msra.mxu0 0.0
  %837 = vmatprep.subr.mxu0 0.0
  %838 = vmatpush2.msra.mxu0 0.0
  %839 = vmatprep.subr.mxu0 0.0
  %840 = vmatpush2.msra.mxu0 0.0
  %841 = vmatprep.subr.mxu0 0.0
  %842 = vmatpush2.msra.mxu0 0.0
  %843 = vmatprep.mubr.f32.mxu0 0.0
  %844 = vmatmul.mubr.f32.gmra.mxu0 %v706
  %v845 = vpop.f32.mrf.mxu0
  %v846 = vadd.f32 0.0, %v845
  %v847 = vpop.f32.mrf.mxu0
  %v848 = vadd.f32 0.0, %v847
  %849 = vdwg.mxu0
  %850 = vmatprep.subr.mxu0 0.0
  %851 = vmatpush1.msra.mxu0 0.0
  %852 = vmatprep.subr.mxu0 0.0
  %853 = vmatpush1.msra.mxu0 0.0
  %854 = vmatprep.subr.mxu0 0.0
  %855 = vmatpush1.msra.mxu0 0.0
  %856 = vmatprep.subr.mxu0 0.0
  %857 = vmatpush1.msra.mxu0 0.0
  %858 = vmatprep.subr.mxu0 0.0
  %859 = vmatpush1.msra.mxu0 0.0
  %860 = vmatprep.subr.mxu0 0.0
  %861 = vmatpush1.msra.mxu0 0.0
  %862 = vmatprep.subr.mxu0 0.0
  %863 = vmatpush1.msra.mxu0 0.0
  %864 = vmatprep.subr.mxu0 %v649
  %865 = vmatpush1.msra.mxu0 %v648
  %866 = vmatprep.subr.mxu0 %v643
  %867 = vmatpush1.msra.mxu0 %v642
  %868 = vmatprep.subr.mxu0 %v637
  %869 = vmatpush1.msra.mxu0 %v636
  %870 = vmatprep.subr.mxu0 %v631
  %871 = vmatpush1.msra.mxu0 %v630
  %872 = vmatprep.subr.mxu0 %v625
  %873 = vmatpush1.msra.mxu0 %v624
  %874 = vmatprep.subr.mxu0 %v619
  %875 = vmatpush1.msra.mxu0 %v618
  %876 = vmatprep.subr.mxu0 %v613
  %877 = vmatpush1.msra.mxu0 %v612
  %878 = vmatprep.subr.mxu0 %v607
  %879 = vmatpush1.msra.mxu0 %v606
  %880 = vmatprep.subr.mxu0 %v601
  %881 = vmatpush1.msra.mxu0 %v600
  %882 = vmatprep.subr.mxu0 0.0
  %883 = vmatpush2.msra.mxu0 0.0
  %884 = vmatprep.subr.mxu0 0.0
  %885 = vmatpush2.msra.mxu0 0.0
  %886 = vmatprep.subr.mxu0 0.0
  %887 = vmatpush2.msra.mxu0 0.0
  %888 = vmatprep.subr.mxu0 0.0
  %889 = vmatpush2.msra.mxu0 0.0
  %890 = vmatprep.subr.mxu0 0.0
  %891 = vmatpush2.msra.mxu0 0.0
  %892 = vmatprep.subr.mxu0 0.0
  %893 = vmatpush2.msra.mxu0 0.0
  %894 = vmatprep.subr.mxu0 0.0
  %895 = vmatpush2.msra.mxu0 0.0
  %896 = vmatprep.subr.mxu0 0.0
  %897 = vmatpush2.msra.mxu0 0.0
  %898 = vmatprep.subr.mxu0 0.0
  %899 = vmatpush2.msra.mxu0 0.0
  %900 = vmatprep.subr.mxu0 0.0
  %901 = vmatpush2.msra.mxu0 0.0
  %902 = vmatprep.subr.mxu0 0.0
  %903 = vmatpush2.msra.mxu0 0.0
  %904 = vmatprep.subr.mxu0 0.0
  %905 = vmatpush2.msra.mxu0 0.0
  %906 = vmatprep.subr.mxu0 0.0
  %907 = vmatpush2.msra.mxu0 0.0
  %908 = vmatprep.subr.mxu0 0.0
  %909 = vmatpush2.msra.mxu0 0.0
  %910 = vmatprep.subr.mxu0 0.0
  %911 = vmatpush2.msra.mxu0 0.0
  %912 = vmatprep.subr.mxu0 0.0
  %913 = vmatpush2.msra.mxu0 0.0
  %914 = vmatprep.mubr.f32.mxu0 0.0
  %915 = vmatmul.mubr.f32.gmra.mxu0 %v706
  %v916 = vpop.f32.mrf.mxu0
  %v917 = vadd.f32 0.0, %v916
  %v918 = vpop.f32.mrf.mxu0
  %v919 = vadd.f32 0.0, %v918
  %920 = vdwg.mxu0
  %v921 = vmul.f32 %v775, %v265
  %v922 = vmul.f32 %v777, %v266
  %v923 = vmul.f32 %v846, %v267
  %v924 = vmul.f32 %v848, %v268
  %v925 = vmul.f32 %v917, %v269
  %v926 = vmul.f32 %v919, %v270
  %v927 = vadd.f32 %v921, %v922
  %v928 = vadd.f32 %v927, %v923
  %v929 = vadd.f32 %v928, %v924
  %v930 = vadd.f32 %v929, %v925
  %v931 = vadd.f32 %v930, %v926
  %932 = vadd.xlane.f32.xlu0 %v931
  %v933 = vpop.xlane.xlu0 %932
  %v934 = vrcp.pop 512.0
  %v935 = vmul.f32 %v933, %v934
  %v936 = vmul.f32 %v921, %v921
  %v937 = vmul.f32 %v922, %v922
  %v938 = vmul.f32 %v923, %v923
  %v939 = vmul.f32 %v924, %v924
  %v940 = vmul.f32 %v925, %v925
  %v941 = vmul.f32 %v926, %v926
  %v942 = vadd.f32 %v936, %v937
  %v943 = vadd.f32 %v942, %v938
  %v944 = vadd.f32 %v943, %v939
  %v945 = vadd.f32 %v944, %v940
  %v946 = vadd.f32 %v945, %v941
  %947 = vadd.xlane.f32.xlu0 %v946
  %v948 = vpop.xlane.xlu0 %947
  %v949 = vmul.f32 %v948, %v934
  %v950 = vmul.f32 %v935, %v935
  %v951 = vsub.f32 %v949, %v950
  %v952 = vadd.f32 %v951, 1e-05
  %v953 = vrsqrt.pop %v952
  %v954 = vsub.f32 %v775, %v935
  %v955 = vsub.f32 %v777, %v935
  %v956 = vsub.f32 %v846, %v935
  %v957 = vsub.f32 %v848, %v935
  %v958 = vsub.f32 %v917, %v935
  %v959 = vsub.f32 %v919, %v935
  %v960 = vmul.f32 %v954, %v953
  %v961 = vmul.f32 %v955, %v953
  %v962 = vmul.f32 %v956, %v953
  %v963 = vmul.f32 %v957, %v953
  %v964 = vmul.f32 %v958, %v953
  %v965 = vmul.f32 %v959, %v953
  %v966 = vmax.f32 %v960, 0.0
  %v967 = vmax.f32 %v961, 0.0
  %v968 = vmax.f32 %v962, 0.0
  %v969 = vmax.f32 %v963, 0.0
  %v970 = vmax.f32 %v964, 0.0
  %v971 = vmax.f32 %v965, 0.0
  %v972 = vmul.f32 %v966, %v265
  %v973 = vmul.f32 %v967, %v266
  %v974 = vmul.f32 %v968, %v267
  %v975 = vmul.f32 %v969, %v268
  %v976 = vmul.f32 %v970, %v269
  %v977 = vmul.f32 %v971, %v270
  %978 = vst [vmem:[#allocation3 + $0x8] sm:$0xff] %v972
  %979 = vst [vmem:[#allocation3 + $0x10] sm:$0xff] %v973
  %980 = vst [vmem:[#allocation3 + $0x18] sm:$0xff] %v974
  %981 = vst [vmem:[#allocation3 + $0x20] sm:$0xff] %v975
  %982 = vst [vmem:[#allocation3 + $0x28] sm:$0xff] %v976
  %983 = vst [vmem:[#allocation3 + $0x30] sm:$0xff] %v977
  %v984 = vld [vmem:[#allocation3] sm:$0xff]
  %v985 = vld [vmem:[#allocation3 + $0x8] sm:$0xff]
  %v986 = vld [vmem:[#allocation3 + $0x10] sm:$0xff]
  %v987 = vld [vmem:[#allocation3 + $0x18] sm:$0xff]
  %v988 = vld [vmem:[#allocation3 + $0x20] sm:$0xff]
  %v989 = vld [vmem:[#allocation3 + $0x28] sm:$0xff]
  %v990 = vld [vmem:[#allocation3 + $0x30] sm:$0xff]
  %v991 = vld [vmem:[#allocation3 + $0x8] sm:$0xff]
  %v992 = vld [vmem:[#allocation3 + $0x10] sm:$0xff]
  %v993 = vld [vmem:[#allocation3 + $0x18] sm:$0xff]
  %v994 = vld [vmem:[#allocation3 + $0x20] sm:$0xff]
  %v995 = vld [vmem:[#allocation3 + $0x28] sm:$0xff]
  %v996 = vld [vmem:[#allocation3 + $0x30] sm:$0xff]
  %v997 = vld [vmem:[#allocation3 + $0x38] sm:$0xff]
  %1005 = vrot.lane.b32.xlu0 %v984, 127
  %v1006 = vpop.permute.xlu0 %1005
  %1007 = vrot.lane.b32.xlu0 %v985, 127
  %v1008 = vpop.permute.xlu0 %1007
  %1009 = vrot.lane.b32.xlu0 %v986, 127
  %v1010 = vpop.permute.xlu0 %1009
  %1011 = vrot.lane.b32.xlu0 %v987, 127
  %v1012 = vpop.permute.xlu0 %1011
  %1013 = vrot.lane.b32.xlu0 %v988, 127
  %v1014 = vpop.permute.xlu0 %1013
  %1015 = vrot.lane.b32.xlu0 %v989, 127
  %v1016 = vpop.permute.xlu0 %1015
  %1017 = vrot.lane.b32.xlu0 %v990, 127
  %v1018 = vpop.permute.xlu0 %1017
  %v1019 = vsel %vm310, %v1006, %v1008
  %v1020 = vsel %vm310, %v1008, %v1010
  %v1021 = vsel %vm310, %v1010, %v1012
  %v1022 = vsel %vm310, %v1012, %v1014
  %v1023 = vsel %vm310, %v1014, %v1016
  %v1024 = vsel %vm310, %v1016, %v1018
  %1025 = vrot.lane.b32.xlu0 %v984, 126
  %v1026 = vpop.permute.xlu0 %1025
  %1027 = vrot.lane.b32.xlu0 %v985, 126
  %v1028 = vpop.permute.xlu0 %1027
  %1029 = vrot.lane.b32.xlu0 %v986, 126
  %v1030 = vpop.permute.xlu0 %1029
  %1031 = vrot.lane.b32.xlu0 %v987, 126
  %v1032 = vpop.permute.xlu0 %1031
  %1033 = vrot.lane.b32.xlu0 %v988, 126
  %v1034 = vpop.permute.xlu0 %1033
  %1035 = vrot.lane.b32.xlu0 %v989, 126
  %v1036 = vpop.permute.xlu0 %1035
  %1037 = vrot.lane.b32.xlu0 %v990, 126
  %v1038 = vpop.permute.xlu0 %1037
  %v1039 = vsel %vm331, %v1026, %v1028
  %v1040 = vsel %vm331, %v1028, %v1030
  %v1041 = vsel %vm331, %v1030, %v1032
  %v1042 = vsel %vm331, %v1032, %v1034
  %v1043 = vsel %vm331, %v1034, %v1036
  %v1044 = vsel %vm331, %v1036, %v1038
  %1045 = vrot.lane.b32.xlu0 %v984, 110
  %v1046 = vpop.permute.xlu0 %1045
  %1047 = vrot.lane.b32.xlu0 %v985, 110
  %v1048 = vpop.permute.xlu0 %1047
  %1049 = vrot.lane.b32.xlu0 %v986, 110
  %v1050 = vpop.permute.xlu0 %1049
  %1051 = vrot.lane.b32.xlu0 %v987, 110
  %v1052 = vpop.permute.xlu0 %1051
  %1053 = vrot.lane.b32.xlu0 %v988, 110
  %v1054 = vpop.permute.xlu0 %1053
  %1055 = vrot.lane.b32.xlu0 %v989, 110
  %v1056 = vpop.permute.xlu0 %1055
  %1057 = vrot.lane.b32.xlu0 %v990, 110
  %v1058 = vpop.permute.xlu0 %1057
  %v1059 = vsel %vm352, %v1046, %v1048
  %v1060 = vsel %vm352, %v1048, %v1050
  %v1061 = vsel %vm352, %v1050, %v1052
  %v1062 = vsel %vm352, %v1052, %v1054
  %v1063 = vsel %vm352, %v1054, %v1056
  %v1064 = vsel %vm352, %v1056, %v1058
  %1065 = vrot.lane.b32.xlu0 %v985, 109
  %v1066 = vpop.permute.xlu0 %1065
  %1067 = vrot.lane.b32.xlu0 %v986, 109
  %v1068 = vpop.permute.xlu0 %1067
  %1069 = vrot.lane.b32.xlu0 %v987, 109
  %v1070 = vpop.permute.xlu0 %1069
  %1071 = vrot.lane.b32.xlu0 %v988, 109
  %v1072 = vpop.permute.xlu0 %1071
  %1073 = vrot.lane.b32.xlu0 %v989, 109
  %v1074 = vpop.permute.xlu0 %1073
  %1075 = vrot.lane.b32.xlu0 %v990, 109
  %v1076 = vpop.permute.xlu0 %1075
  %v1077 = vsel %vm371, %v1066, %v1068
  %v1078 = vsel %vm371, %v1068, %v1070
  %v1079 = vsel %vm371, %v1070, %v1072
  %v1080 = vsel %vm371, %v1072, %v1074
  %v1081 = vsel %vm371, %v1074, %v1076
  %1089 = vrot.lane.b32.xlu0 %v991, 108
  %v1090 = vpop.permute.xlu0 %1089
  %1091 = vrot.lane.b32.xlu0 %v992, 108
  %v1092 = vpop.permute.xlu0 %1091
  %1093 = vrot.lane.b32.xlu0 %v993, 108
  %v1094 = vpop.permute.xlu0 %1093
  %1095 = vrot.lane.b32.xlu0 %v994, 108
  %v1096 = vpop.permute.xlu0 %1095
  %1097 = vrot.lane.b32.xlu0 %v995, 108
  %v1098 = vpop.permute.xlu0 %1097
  %1099 = vrot.lane.b32.xlu0 %v996, 108
  %v1100 = vpop.permute.xlu0 %1099
  %1101 = vrot.lane.b32.xlu0 %v997, 108
  %v1102 = vpop.permute.xlu0 %1101
  %v1103 = vsel %vm398, %v1090, %v1092
  %v1104 = vsel %vm398, %v1092, %v1094
  %v1105 = vsel %vm398, %v1094, %v1096
  %v1106 = vsel %vm398, %v1096, %v1098
  %v1107 = vsel %vm398, %v1098, %v1100
  %v1108 = vsel %vm398, %v1100, %v1102
  %1109 = vrot.lane.b32.xlu0 %v991, 92
  %v1110 = vpop.permute.xlu0 %1109
  %1111 = vrot.lane.b32.xlu0 %v992, 92
  %v1112 = vpop.permute.xlu0 %1111
  %1113 = vrot.lane.b32.xlu0 %v993, 92
  %v1114 = vpop.permute.xlu0 %1113
  %1115 = vrot.lane.b32.xlu0 %v994, 92
  %v1116 = vpop.permute.xlu0 %1115
  %1117 = vrot.lane.b32.xlu0 %v995, 92
  %v1118 = vpop.permute.xlu0 %1117
  %1119 = vrot.lane.b32.xlu0 %v996, 92
  %v1120 = vpop.permute.xlu0 %1119
  %1121 = vrot.lane.b32.xlu0 %v997, 92
  %v1122 = vpop.permute.xlu0 %1121
  %v1123 = vsel %vm419, %v1110, %v1112
  %v1124 = vsel %vm419, %v1112, %v1114
  %v1125 = vsel %vm419, %v1114, %v1116
  %v1126 = vsel %vm419, %v1116, %v1118
  %v1127 = vsel %vm419, %v1118, %v1120
  %v1128 = vsel %vm419, %v1120, %v1122
  %1129 = vrot.lane.b32.xlu0 %v991, 91
  %v1130 = vpop.permute.xlu0 %1129
  %1131 = vrot.lane.b32.xlu0 %v992, 91
  %v1132 = vpop.permute.xlu0 %1131
  %1133 = vrot.lane.b32.xlu0 %v993, 91
  %v1134 = vpop.permute.xlu0 %1133
  %1135 = vrot.lane.b32.xlu0 %v994, 91
  %v1136 = vpop.permute.xlu0 %1135
  %1137 = vrot.lane.b32.xlu0 %v995, 91
  %v1138 = vpop.permute.xlu0 %1137
  %1139 = vrot.lane.b32.xlu0 %v996, 91
  %v1140 = vpop.permute.xlu0 %1139
  %1141 = vrot.lane.b32.xlu0 %v997, 91
  %v1142 = vpop.permute.xlu0 %1141
  %v1143 = vsel %vm440, %v1130, %v1132
  %v1144 = vsel %vm440, %v1132, %v1134
  %v1145 = vsel %vm440, %v1134, %v1136
  %v1146 = vsel %vm440, %v1136, %v1138
  %v1147 = vsel %vm440, %v1138, %v1140
  %v1148 = vsel %vm440, %v1140, %v1142
  %1149 = vrot.lane.b32.xlu0 %v991, 90
  %v1150 = vpop.permute.xlu0 %1149
  %1151 = vrot.lane.b32.xlu0 %v992, 90
  %v1152 = vpop.permute.xlu0 %1151
  %1153 = vrot.lane.b32.xlu0 %v993, 90
  %v1154 = vpop.permute.xlu0 %1153
  %1155 = vrot.lane.b32.xlu0 %v994, 90
  %v1156 = vpop.permute.xlu0 %1155
  %1157 = vrot.lane.b32.xlu0 %v995, 90
  %v1158 = vpop.permute.xlu0 %1157
  %1159 = vrot.lane.b32.xlu0 %v996, 90
  %v1160 = vpop.permute.xlu0 %1159
  %1161 = vrot.lane.b32.xlu0 %v997, 90
  %v1162 = vpop.permute.xlu0 %1161
  %v1163 = vsel %vm461, %v1150, %v1152
  %v1164 = vsel %vm461, %v1152, %v1154
  %v1165 = vsel %vm461, %v1154, %v1156
  %v1166 = vsel %vm461, %v1156, %v1158
  %v1167 = vsel %vm461, %v1158, %v1160
  %v1168 = vsel %vm461, %v1160, %v1162
  %v1169 = vld [vmem:[%s2] sm:$0xff]
  %1170 = vrot.lane.b32.xlu0 %v984, 19
  %v1171 = vpop.permute.xlu0 %1170
  %1172 = vrot.lane.b32.xlu0 %v985, 19
  %v1173 = vpop.permute.xlu0 %1172
  %1174 = vrot.lane.b32.xlu0 %v986, 19
  %v1175 = vpop.permute.xlu0 %1174
  %1176 = vrot.lane.b32.xlu0 %v987, 19
  %v1177 = vpop.permute.xlu0 %1176
  %1178 = vrot.lane.b32.xlu0 %v988, 19
  %v1179 = vpop.permute.xlu0 %1178
  %1180 = vrot.lane.b32.xlu0 %v989, 19
  %v1181 = vpop.permute.xlu0 %1180
  %1182 = vrot.lane.b32.xlu0 %v990, 19
  %v1183 = vpop.permute.xlu0 %1182
  %1184 = vrot.lane.b32.xlu0 %v1019, 19
  %v1185 = vpop.permute.xlu0 %1184
  %1186 = vrot.lane.b32.xlu0 %v1020, 19
  %v1187 = vpop.permute.xlu0 %1186
  %1188 = vrot.lane.b32.xlu0 %v1021, 19
  %v1189 = vpop.permute.xlu0 %1188
  %1190 = vrot.lane.b32.xlu0 %v1022, 19
  %v1191 = vpop.permute.xlu0 %1190
  %1192 = vrot.lane.b32.xlu0 %v1023, 19
  %v1193 = vpop.permute.xlu0 %1192
  %1194 = vrot.lane.b32.xlu0 %v1024, 19
  %v1195 = vpop.permute.xlu0 %1194
  %1196 = vrot.lane.b32.xlu0 %v1018, 19
  %v1197 = vpop.permute.xlu0 %1196
  %1198 = vrot.lane.b32.xlu0 %v1039, 19
  %v1199 = vpop.permute.xlu0 %1198
  %1200 = vrot.lane.b32.xlu0 %v1040, 19
  %v1201 = vpop.permute.xlu0 %1200
  %1202 = vrot.lane.b32.xlu0 %v1041, 19
  %v1203 = vpop.permute.xlu0 %1202
  %1204 = vrot.lane.b32.xlu0 %v1042, 19
  %v1205 = vpop.permute.xlu0 %1204
  %1206 = vrot.lane.b32.xlu0 %v1043, 19
  %v1207 = vpop.permute.xlu0 %1206
  %1208 = vrot.lane.b32.xlu0 %v1044, 19
  %v1209 = vpop.permute.xlu0 %1208
  %1210 = vrot.lane.b32.xlu0 %v1038, 19
  %v1211 = vpop.permute.xlu0 %1210
  %1212 = vrot.lane.b32.xlu0 %v1059, 19
  %v1213 = vpop.permute.xlu0 %1212
  %1214 = vrot.lane.b32.xlu0 %v1060, 19
  %v1215 = vpop.permute.xlu0 %1214
  %1216 = vrot.lane.b32.xlu0 %v1061, 19
  %v1217 = vpop.permute.xlu0 %1216
  %1218 = vrot.lane.b32.xlu0 %v1062, 19
  %v1219 = vpop.permute.xlu0 %1218
  %1220 = vrot.lane.b32.xlu0 %v1063, 19
  %v1221 = vpop.permute.xlu0 %1220
  %1222 = vrot.lane.b32.xlu0 %v1064, 19
  %v1223 = vpop.permute.xlu0 %1222
  %1224 = vrot.lane.b32.xlu0 %v1058, 19
  %v1225 = vpop.permute.xlu0 %1224
  %1226 = vrot.lane.b32.xlu0 %v1066, 19
  %v1227 = vpop.permute.xlu0 %1226
  %1228 = vrot.lane.b32.xlu0 %v1077, 19
  %v1229 = vpop.permute.xlu0 %1228
  %1230 = vrot.lane.b32.xlu0 %v1078, 19
  %v1231 = vpop.permute.xlu0 %1230
  %1232 = vrot.lane.b32.xlu0 %v1079, 19
  %v1233 = vpop.permute.xlu0 %1232
  %1234 = vrot.lane.b32.xlu0 %v1080, 19
  %v1235 = vpop.permute.xlu0 %1234
  %1236 = vrot.lane.b32.xlu0 %v1081, 19
  %v1237 = vpop.permute.xlu0 %1236
  %1238 = vrot.lane.b32.xlu0 %v1076, 19
  %v1239 = vpop.permute.xlu0 %1238
  %1240 = vrot.lane.b32.xlu0 %v1090, 19
  %v1241 = vpop.permute.xlu0 %1240
  %1242 = vrot.lane.b32.xlu0 %v1103, 19
  %v1243 = vpop.permute.xlu0 %1242
  %1244 = vrot.lane.b32.xlu0 %v1104, 19
  %v1245 = vpop.permute.xlu0 %1244
  %1246 = vrot.lane.b32.xlu0 %v1105, 19
  %v1247 = vpop.permute.xlu0 %1246
  %1248 = vrot.lane.b32.xlu0 %v1106, 19
  %v1249 = vpop.permute.xlu0 %1248
  %1250 = vrot.lane.b32.xlu0 %v1107, 19
  %v1251 = vpop.permute.xlu0 %1250
  %1252 = vrot.lane.b32.xlu0 %v1108, 19
  %v1253 = vpop.permute.xlu0 %1252
  %1254 = vrot.lane.b32.xlu0 %v1110, 19
  %v1255 = vpop.permute.xlu0 %1254
  %1256 = vrot.lane.b32.xlu0 %v1123, 19
  %v1257 = vpop.permute.xlu0 %1256
  %1258 = vrot.lane.b32.xlu0 %v1124, 19
  %v1259 = vpop.permute.xlu0 %1258
  %1260 = vrot.lane.b32.xlu0 %v1125, 19
  %v1261 = vpop.permute.xlu0 %1260
  %1262 = vrot.lane.b32.xlu0 %v1126, 19
  %v1263 = vpop.permute.xlu0 %1262
  %1264 = vrot.lane.b32.xlu0 %v1127, 19
  %v1265 = vpop.permute.xlu0 %1264
  %1266 = vrot.lane.b32.xlu0 %v1128, 19
  %v1267 = vpop.permute.xlu0 %1266
  %1268 = vrot.lane.b32.xlu0 %v1130, 19
  %v1269 = vpop.permute.xlu0 %1268
  %1270 = vrot.lane.b32.xlu0 %v1143, 19
  %v1271 = vpop.permute.xlu0 %1270
  %1272 = vrot.lane.b32.xlu0 %v1144, 19
  %v1273 = vpop.permute.xlu0 %1272
  %1274 = vrot.lane.b32.xlu0 %v1145, 19
  %v1275 = vpop.permute.xlu0 %1274
  %1276 = vrot.lane.b32.xlu0 %v1146, 19
  %v1277 = vpop.permute.xlu0 %1276
  %1278 = vrot.lane.b32.xlu0 %v1147, 19
  %v1279 = vpop.permute.xlu0 %1278
  %1280 = vrot.lane.b32.xlu0 %v1148, 19
  %v1281 = vpop.permute.xlu0 %1280
  %1282 = vrot.lane.b32.xlu0 %v1150, 19
  %v1283 = vpop.permute.xlu0 %1282
  %1284 = vrot.lane.b32.xlu0 %v1163, 19
  %v1285 = vpop.permute.xlu0 %1284
  %1286 = vrot.lane.b32.xlu0 %v1164, 19
  %v1287 = vpop.permute.xlu0 %1286
  %1288 = vrot.lane.b32.xlu0 %v1165, 19
  %v1289 = vpop.permute.xlu0 %1288
  %1290 = vrot.lane.b32.xlu0 %v1166, 19
  %v1291 = vpop.permute.xlu0 %1290
  %1292 = vrot.lane.b32.xlu0 %v1167, 19
  %v1293 = vpop.permute.xlu0 %1292
  %1294 = vrot.lane.b32.xlu0 %v1168, 19
  %v1295 = vpop.permute.xlu0 %1294
  %v1296 = vsel %vm595, %v1171, %v1173
  %v1297 = vsel %vm595, %v1173, %v1175
  %v1298 = vsel %vm595, %v1175, %v1177
  %v1299 = vsel %vm595, %v1177, %v1179
  %v1300 = vsel %vm595, %v1179, %v1181
  %v1301 = vsel %vm595, %v1181, %v1183
  %v1302 = vsel %vm595, %v1185, %v1187
  %v1303 = vsel %vm595, %v1187, %v1189
  %v1304 = vsel %vm595, %v1189, %v1191
  %v1305 = vsel %vm595, %v1191, %v1193
  %v1306 = vsel %vm595, %v1193, %v1195
  %v1307 = vsel %vm595, %v1195, %v1197
  %v1308 = vsel %vm595, %v1199, %v1201
  %v1309 = vsel %vm595, %v1201, %v1203
  %v1310 = vsel %vm595, %v1203, %v1205
  %v1311 = vsel %vm595, %v1205, %v1207
  %v1312 = vsel %vm595, %v1207, %v1209
  %v1313 = vsel %vm595, %v1209, %v1211
  %v1314 = vsel %vm595, %v1213, %v1215
  %v1315 = vsel %vm595, %v1215, %v1217
  %v1316 = vsel %vm595, %v1217, %v1219
  %v1317 = vsel %vm595, %v1219, %v1221
  %v1318 = vsel %vm595, %v1221, %v1223
  %v1319 = vsel %vm595, %v1223, %v1225
  %v1320 = vsel %vm595, %v1227, %v1229
  %v1321 = vsel %vm595, %v1229, %v1231
  %v1322 = vsel %vm595, %v1231, %v1233
  %v1323 = vsel %vm595, %v1233, %v1235
  %v1324 = vsel %vm595, %v1235, %v1237
  %v1325 = vsel %vm595, %v1237, %v1239
  %v1326 = vsel %vm595, %v1241, %v1243
  %v1327 = vsel %vm595, %v1243, %v1245
  %v1328 = vsel %vm595, %v1245, %v1247
  %v1329 = vsel %vm595, %v1247, %v1249
  %v1330 = vsel %vm595, %v1249, %v1251
  %v1331 = vsel %vm595, %v1251, %v1253
  %v1332 = vsel %vm595, %v1255, %v1257
  %v1333 = vsel %vm595, %v1257, %v1259
  %v1334 = vsel %vm595, %v1259, %v1261
  %v1335 = vsel %vm595, %v1261, %v1263
  %v1336 = vsel %vm595, %v1263, %v1265
  %v1337 = vsel %vm595, %v1265, %v1267
  %v1338 = vsel %vm595, %v1269, %v1271
  %v1339 = vsel %vm595, %v1271, %v1273
  %v1340 = vsel %vm595, %v1273, %v1275
  %v1341 = vsel %vm595, %v1275, %v1277
  %v1342 = vsel %vm595, %v1277, %v1279
  %v1343 = vsel %vm595, %v1279, %v1281
  %v1344 = vsel %vm595, %v1283, %v1285
  %v1345 = vsel %vm595, %v1285, %v1287
  %v1346 = vsel %vm595, %v1287, %v1289
  %v1347 = vsel %vm595, %v1289, %v1291
  %v1348 = vsel %vm595, %v1291, %v1293
  %v1349 = vsel %vm595, %v1293, %v1295
  %v1405 = vsel %vm704, %v1169, 0
  %1407 = vmatprep.subr.mxu0 0.0
  %1408 = vmatpush1.msra.mxu0 0.0
  %1409 = vmatprep.subr.mxu0 0.0
  %1410 = vmatpush1.msra.mxu0 0.0
  %1411 = vmatprep.subr.mxu0 0.0
  %1412 = vmatpush1.msra.mxu0 0.0
  %1413 = vmatprep.subr.mxu0 0.0
  %1414 = vmatpush1.msra.mxu0 0.0
  %1415 = vmatprep.subr.mxu0 0.0
  %1416 = vmatpush1.msra.mxu0 0.0
  %1417 = vmatprep.subr.mxu0 0.0
  %1418 = vmatpush1.msra.mxu0 0.0
  %1419 = vmatprep.subr.mxu0 0.0
  %1420 = vmatpush1.msra.mxu0 0.0
  %1421 = vmatprep.subr.mxu0 %v1345
  %1422 = vmatpush1.msra.mxu0 %v1344
  %1423 = vmatprep.subr.mxu0 %v1339
  %1424 = vmatpush1.msra.mxu0 %v1338
  %1425 = vmatprep.subr.mxu0 %v1333
  %1426 = vmatpush1.msra.mxu0 %v1332
  %1427 = vmatprep.subr.mxu0 %v1327
  %1428 = vmatpush1.msra.mxu0 %v1326
  %1429 = vmatprep.subr.mxu0 %v1321
  %1430 = vmatpush1.msra.mxu0 %v1320
  %1431 = vmatprep.subr.mxu0 %v1315
  %1432 = vmatpush1.msra.mxu0 %v1314
  %1433 = vmatprep.subr.mxu0 %v1309
  %1434 = vmatpush1.msra.mxu0 %v1308
  %1435 = vmatprep.subr.mxu0 %v1303
  %1436 = vmatpush1.msra.mxu0 %v1302
  %1437 = vmatprep.subr.mxu0 %v1297
  %1438 = vmatpush1.msra.mxu0 %v1296
  %1439 = vmatprep.subr.mxu0 0.0
  %1440 = vmatpush2.msra.mxu0 0.0
  %1441 = vmatprep.subr.mxu0 0.0
  %1442 = vmatpush2.msra.mxu0 0.0
  %1443 = vmatprep.subr.mxu0 0.0
  %1444 = vmatpush2.msra.mxu0 0.0
  %1445 = vmatprep.subr.mxu0 0.0
  %1446 = vmatpush2.msra.mxu0 0.0
  %1447 = vmatprep.subr.mxu0 0.0
  %1448 = vmatpush2.msra.mxu0 0.0
  %1449 = vmatprep.subr.mxu0 0.0
  %1450 = vmatpush2.msra.mxu0 0.0
  %1451 = vmatprep.subr.mxu0 0.0
  %1452 = vmatpush2.msra.mxu0 0.0
  %1453 = vmatprep.subr.mxu0 0.0
  %1454 = vmatpush2.msra.mxu0 0.0
  %1455 = vmatprep.subr.mxu0 0.0
  %1456 = vmatpush2.msra.mxu0 0.0
  %1457 = vmatprep.subr.mxu0 0.0
  %1458 = vmatpush2.msra.mxu0 0.0
  %1459 = vmatprep.subr.mxu0 0.0
  %1460 = vmatpush2.msra.mxu0 0.0
  %1461 = vmatprep.subr.mxu0 0.0
  %1462 = vmatpush2.msra.mxu0 0.0
  %1463 = vmatprep.subr.mxu0 0.0
  %1464 = vmatpush2.msra.mxu0 0.0
  %1465 = vmatprep.subr.mxu0 0.0
  %1466 = vmatpush2.msra.mxu0 0.0
  %1467 = vmatprep.subr.mxu0 0.0
  %1468 = vmatpush2.msra.mxu0 0.0
  %1469 = vmatprep.subr.mxu0 0.0
  %1470 = vmatpush2.msra.mxu0 0.0
  %1471 = vmatprep.mubr.f32.mxu0 0.0
  %1472 = vmatmul.mubr.f32.gmra.mxu0 %v1405
  %v1473 = vpop.f32.mrf.mxu0
  %v1474 = vadd.f32 0.0, %v1473
  %v1475 = vpop.f32.mrf.mxu0
  %v1476 = vadd.f32 0.0, %v1475
  %1477 = vdwg.mxu0
  %1478 = vmatprep.subr.mxu0 0.0
  %1479 = vmatpush1.msra.mxu0 0.0
  %1480 = vmatprep.subr.mxu0 0.0
  %1481 = vmatpush1.msra.mxu0 0.0
  %1482 = vmatprep.subr.mxu0 0.0
  %1483 = vmatpush1.msra.mxu0 0.0
  %1484 = vmatprep.subr.mxu0 0.0
  %1485 = vmatpush1.msra.mxu0 0.0
  %1486 = vmatprep.subr.mxu0 0.0
  %1487 = vmatpush1.msra.mxu0 0.0
  %1488 = vmatprep.subr.mxu0 0.0
  %1489 = vmatpush1.msra.mxu0 0.0
  %1490 = vmatprep.subr.mxu0 0.0
  %1491 = vmatpush1.msra.mxu0 0.0
  %1492 = vmatprep.subr.mxu0 %v1347
  %1493 = vmatpush1.msra.mxu0 %v1346
  %1494 = vmatprep.subr.mxu0 %v1341
  %1495 = vmatpush1.msra.mxu0 %v1340
  %1496 = vmatprep.subr.mxu0 %v1335
  %1497 = vmatpush1.msra.mxu0 %v1334
  %1498 = vmatprep.subr.mxu0 %v1329
  %1499 = vmatpush1.msra.mxu0 %v1328
  %1500 = vmatprep.subr.mxu0 %v1323
  %1501 = vmatpush1.msra.mxu0 %v1322
  %1502 = vmatprep.subr.mxu0 %v1317
  %1503 = vmatpush1.msra.mxu0 %v1316
  %1504 = vmatprep.subr.mxu0 %v1311
  %1505 = vmatpush1.msra.mxu0 %v1310
  %1506 = vmatprep.subr.mxu0 %v1305
  %1507 = vmatpush1.msra.mxu0 %v1304
  %1508 = vmatprep.subr.mxu0 %v1299
  %1509 = vmatpush1.msra.mxu0 %v1298
  %1510 = vmatprep.subr.mxu0 0.0
  %1511 = vmatpush2.msra.mxu0 0.0
  %1512 = vmatprep.subr.mxu0 0.0
  %1513 = vmatpush2.msra.mxu0 0.0
  %1514 = vmatprep.subr.mxu0 0.0
  %1515 = vmatpush2.msra.mxu0 0.0
  %1516 = vmatprep.subr.mxu0 0.0
  %1517 = vmatpush2.msra.mxu0 0.0
  %1518 = vmatprep.subr.mxu0 0.0
  %1519 = vmatpush2.msra.mxu0 0.0
  %1520 = vmatprep.subr.mxu0 0.0
  %1521 = vmatpush2.msra.mxu0 0.0
  %1522 = vmatprep.subr.mxu0 0.0
  %1523 = vmatpush2.msra.mxu0 0.0
  %1524 = vmatprep.subr.mxu0 0.0
  %1525 = vmatpush2.msra.mxu0 0.0
  %1526 = vmatprep.subr.mxu0 0.0
  %1527 = vmatpush2.msra.mxu0 0.0
  %1528 = vmatprep.subr.mxu0 0.0
  %1529 = vmatpush2.msra.mxu0 0.0
  %1530 = vmatprep.subr.mxu0 0.0
  %1531 = vmatpush2.msra.mxu0 0.0
  %1532 = vmatprep.subr.mxu0 0.0
  %1533 = vmatpush2.msra.mxu0 0.0
  %1534 = vmatprep.subr.mxu0 0.0
  %1535 = vmatpush2.msra.mxu0 0.0
  %1536 = vmatprep.subr.mxu0 0.0
  %1537 = vmatpush2.msra.mxu0 0.0
  %1538 = vmatprep.subr.mxu0 0.0
  %1539 = vmatpush2.msra.mxu0 0.0
  %1540 = vmatprep.subr.mxu0 0.0
  %1541 = vmatpush2.msra.mxu0 0.0
  %1542 = vmatprep.mubr.f32.mxu0 0.0
  %1543 = vmatmul.mubr.f32.gmra.mxu0 %v1405
  %v1544 = vpop.f32.mrf.mxu0
  %v1545 = vadd.f32 0.0, %v1544
  %v1546 = vpop.f32.mrf.mxu0
  %v1547 = vadd.f32 0.0, %v1546
  %1548 = vdwg.mxu0
  %1549 = vmatprep.subr.mxu0 0.0
  %1550 = vmatpush1.msra.mxu0 0.0
  %1551 = vmatprep.subr.mxu0 0.0
  %1552 = vmatpush1.msra.mxu0 0.0
  %1553 = vmatprep.subr.mxu0 0.0
  %1554 = vmatpush1.msra.mxu0 0.0
  %1555 = vmatprep.subr.mxu0 0.0
  %1556 = vmatpush1.msra.mxu0 0.0
  %1557 = vmatprep.subr.mxu0 0.0
  %1558 = vmatpush1.msra.mxu0 0.0
  %1559 = vmatprep.subr.mxu0 0.0
  %1560 = vmatpush1.msra.mxu0 0.0
  %1561 = vmatprep.subr.mxu0 0.0
  %1562 = vmatpush1.msra.mxu0 0.0
  %1563 = vmatprep.subr.mxu0 %v1349
  %1564 = vmatpush1.msra.mxu0 %v1348
  %1565 = vmatprep.subr.mxu0 %v1343
  %1566 = vmatpush1.msra.mxu0 %v1342
  %1567 = vmatprep.subr.mxu0 %v1337
  %1568 = vmatpush1.msra.mxu0 %v1336
  %1569 = vmatprep.subr.mxu0 %v1331
  %1570 = vmatpush1.msra.mxu0 %v1330
  %1571 = vmatprep.subr.mxu0 %v1325
  %1572 = vmatpush1.msra.mxu0 %v1324
  %1573 = vmatprep.subr.mxu0 %v1319
  %1574 = vmatpush1.msra.mxu0 %v1318
  %1575 = vmatprep.subr.mxu0 %v1313
  %1576 = vmatpush1.msra.mxu0 %v1312
  %1577 = vmatprep.subr.mxu0 %v1307
  %1578 = vmatpush1.msra.mxu0 %v1306
  %1579 = vmatprep.subr.mxu0 %v1301
  %1580 = vmatpush1.msra.mxu0 %v1300
  %1581 = vmatprep.subr.mxu0 0.0
  %1582 = vmatpush2.msra.mxu0 0.0
  %1583 = vmatprep.subr.mxu0 0.0
  %1584 = vmatpush2.msra.mxu0 0.0
  %1585 = vmatprep.subr.mxu0 0.0
  %1586 = vmatpush2.msra.mxu0 0.0
  %1587 = vmatprep.subr.mxu0 0.0
  %1588 = vmatpush2.msra.mxu0 0.0
  %1589 = vmatprep.subr.mxu0 0.0
  %1590 = vmatpush2.msra.mxu0 0.0
  %1591 = vmatprep.subr.mxu0 0.0
  %1592 = vmatpush2.msra.mxu0 0.0
  %1593 = vmatprep.subr.mxu0 0.0
  %1594 = vmatpush2.msra.mxu0 0.0
  %1595 = vmatprep.subr.mxu0 0.0
  %1596 = vmatpush2.msra.mxu0 0.0
  %1597 = vmatprep.subr.mxu0 0.0
  %1598 = vmatpush2.msra.mxu0 0.0
  %1599 = vmatprep.subr.mxu0 0.0
  %1600 = vmatpush2.msra.mxu0 0.0
  %1601 = vmatprep.subr.mxu0 0.0
  %1602 = vmatpush2.msra.mxu0 0.0
  %1603 = vmatprep.subr.mxu0 0.0
  %1604 = vmatpush2.msra.mxu0 0.0
  %1605 = vmatprep.subr.mxu0 0.0
  %1606 = vmatpush2.msra.mxu0 0.0
  %1607 = vmatprep.subr.mxu0 0.0
  %1608 = vmatpush2.msra.mxu0 0.0
  %1609 = vmatprep.subr.mxu0 0.0
  %1610 = vmatpush2.msra.mxu0 0.0
  %1611 = vmatprep.subr.mxu0 0.0
  %1612 = vmatpush2.msra.mxu0 0.0
  %1613 = vmatprep.mubr.f32.mxu0 0.0
  %1614 = vmatmul.mubr.f32.gmra.mxu0 %v1405
  %v1615 = vpop.f32.mrf.mxu0
  %v1616 = vadd.f32 0.0, %v1615
  %v1617 = vpop.f32.mrf.mxu0
  %v1618 = vadd.f32 0.0, %v1617
  %1619 = vdwg.mxu0
  %v1620 = vmul.f32 %v1474, %v265
  %v1621 = vmul.f32 %v1476, %v266
  %v1622 = vmul.f32 %v1545, %v267
  %v1623 = vmul.f32 %v1547, %v268
  %v1624 = vmul.f32 %v1616, %v269
  %v1625 = vmul.f32 %v1618, %v270
  %v1626 = vadd.f32 %v1620, %v1621
  %v1627 = vadd.f32 %v1626, %v1622
  %v1628 = vadd.f32 %v1627, %v1623
  %v1629 = vadd.f32 %v1628, %v1624
  %v1630 = vadd.f32 %v1629, %v1625
  %1631 = vadd.xlane.f32.xlu0 %v1630
  %v1632 = vpop.xlane.xlu0 %1631
  %v1633 = vmul.f32 %v1632, %v934
  %v1634 = vmul.f32 %v1620, %v1620
  %v1635 = vmul.f32 %v1621, %v1621
  %v1636 = vmul.f32 %v1622, %v1622
  %v1637 = vmul.f32 %v1623, %v1623
  %v1638 = vmul.f32 %v1624, %v1624
  %v1639 = vmul.f32 %v1625, %v1625
  %v1640 = vadd.f32 %v1634, %v1635
  %v1641 = vadd.f32 %v1640, %v1636
  %v1642 = vadd.f32 %v1641, %v1637
  %v1643 = vadd.f32 %v1642, %v1638
  %v1644 = vadd.f32 %v1643, %v1639
  %1645 = vadd.xlane.f32.xlu0 %v1644
  %v1646 = vpop.xlane.xlu0 %1645
  %v1647 = vmul.f32 %v1646, %v934
  %v1648 = vmul.f32 %v1633, %v1633
  %v1649 = vsub.f32 %v1647, %v1648
  %v1650 = vadd.f32 %v1649, 1e-05
  %v1651 = vrsqrt.pop %v1650
  %v1652 = vsub.f32 %v1474, %v1633
  %v1653 = vsub.f32 %v1476, %v1633
  %v1654 = vsub.f32 %v1545, %v1633
  %v1655 = vsub.f32 %v1547, %v1633
  %v1656 = vsub.f32 %v1616, %v1633
  %v1657 = vsub.f32 %v1618, %v1633
  %v1658 = vmul.f32 %v1652, %v1651
  %v1659 = vmul.f32 %v1653, %v1651
  %v1660 = vmul.f32 %v1654, %v1651
  %v1661 = vmul.f32 %v1655, %v1651
  %v1662 = vmul.f32 %v1656, %v1651
  %v1663 = vmul.f32 %v1657, %v1651
  %v1664 = vmax.f32 %v1658, 0.0
  %v1665 = vmax.f32 %v1659, 0.0
  %v1666 = vmax.f32 %v1660, 0.0
  %v1667 = vmax.f32 %v1661, 0.0
  %v1668 = vmax.f32 %v1662, 0.0
  %v1669 = vmax.f32 %v1663, 0.0
  %1670 = vst [vmem:[%s3] sm:$0xff] %v1664
  %1671 = vst [vmem:[%s3 + $0x8] sm:$0xff] %v1665
  %1672 = vst [vmem:[%s3 + $0x10] sm:$0xff] %v1666
  %1673 = vst [vmem:[%s3 + $0x18] sm:$0xff] %v1667
  %1674 = vst [vmem:[%s3 + $0x20] sm:$0xff] %v1668
  %1675 = vst [vmem:[%s3 + $0x28] sm:$0xff] %v1669
  // Predicated region
  $region44: #{conv_block_forward.1} parent=0 // pred_check
    _
  $region45: #{conv_block_forward.1} parent=0 // pred_check_branch
    %1677 = sbr.rel (0) target = $region47
  $region46: #{conv_block_forward.1} parent=0 // pred_region
    _
  $region47: #{conv_block_forward.1} parent=0 // pred_fallthru
    _
  // Predicated region
  $region48: #{conv_block_forward.1} parent=0 // pred_check
    _
  $region49: #{conv_block_forward.1} parent=0 // pred_check_branch
    %1679 = sbr.rel (0) target = $region51
  $region50: #{conv_block_forward.1} parent=0 // pred_region
    _
  $region51: #{conv_block_forward.1} parent=0 // pred_fallthru
    _
  %1680 = vsyncmov [#allocation4]
  %s1681 = vpop.sfrf %1680
  %p1682 = scmp.eq.s32.totalorder %s1681, 0
  %p1683 = pneg %p1682
  %1685 = shalt.err (%p1683)

</llo_original>
